<compile_context>
chip_gen: v7x
topology: tpu7x:2x2x1
jax: 0.10.0
libtpu: 0.0.40
codegen_flags: <defaults>
</compile_context>

<pallas_src>
import jax
import jax.numpy as jnp
from jax.experimental import pallas as pl
from jax.experimental.pallas import tpu as pltpu


NH = 512          # hidden width (nh in the PyTorch module)
NEG_SLOPE = 0.01  # nn.LeakyReLU default negative slope


def _make_kernel():
    def kernel(x_ref, dom_ref, w1x_ref, w1d_ref, b1_ref,
               w2_ref, b2_ref, w3_ref, b3_ref, w4_ref, b4_ref, o_ref):
        # x_ref:  (TB, nz)   f32        dom_ref: (TB, 1) int32
        # w1x:    (nz, NH)   bf16       w1d: (DPAD, NH) bf16 (zero-padded rows)
        # w2/w3:  (NH, NH)   bf16       w4:  (1, NH) bf16
        # b1/b2/b3: (1, NH)  f32        b4:  (1,) f32 in SMEM
        # o_ref:  (1, 1, TB) f32  (lane-dense logits for this tile)
        TB = x_ref.shape[0]
        DPAD = w1d_ref.shape[0]

        def leaky_relu(v):
            return jnp.maximum(v, NEG_SLOPE * v)

        # ---- layer 1: x @ W1x + onehot(domain) @ W1d + b1 -------------------
        h = jnp.dot(x_ref[...].astype(jnp.bfloat16), w1x_ref[...],
                    preferred_element_type=jnp.float32)
        # One-hot built on-chip (iota == domain) and pushed through the MXU
        # instead of a per-domain VALU select-accumulate loop.
        iota = jax.lax.broadcasted_iota(jnp.int32, (TB, DPAD), 1)
        onehot = (iota == dom_ref[...]).astype(jnp.float32).astype(jnp.bfloat16)
        h = h + jnp.dot(onehot, w1d_ref[...],
                        preferred_element_type=jnp.float32)
        h = leaky_relu(h + b1_ref[...])

        # ---- layer 2 --------------------------------------------------------
        h = leaky_relu(
            jnp.dot(h.astype(jnp.bfloat16), w2_ref[...],
                    preferred_element_type=jnp.float32) + b2_ref[...])

        # ---- layer 3 --------------------------------------------------------
        h = leaky_relu(
            jnp.dot(h.astype(jnp.bfloat16), w3_ref[...],
                    preferred_element_type=jnp.float32) + b3_ref[...])

        # ---- final Linear(NH, 1): w4 (1,NH) contracted against h (TB,NH) on
        #      the feature axis -> lane-dense (1, TB) logits on the MXU --------
        logit = jax.lax.dot_general(
            w4_ref[...], h.astype(jnp.bfloat16),
            dimension_numbers=(((1,), (1,)), ((), ())),
            preferred_element_type=jnp.float32)           # (1, TB)
        logit = logit + b4_ref[0]
        o_ref[...] = jax.nn.sigmoid(logit)[None]          # (1, 1, TB)

    return kernel


def _batch_tiling(B):
    """Pick (TB, B_pad): batch-tile rows and padded batch size.

    * big B   -> TB = 512 (multiple of 256: fills the v6e MXU M dim, amortizes
                  the ~0.35 us per-grid-step overhead)
    * medium  -> exactly two tiles so both v7x TensorCores get work
    * tiny    -> one small tile (rounded to 16 sublanes)
    """
    if B <= 64:
        TB = -(-B // 16) * 16
    elif B <= 1024:
        half = -(-B // 2)
        TB = -(-half // 16) * 16
    else:
        TB = 512
    B_pad = -(-B // TB) * TB
    return TB, B_pad


def dn_dis_one_hot_wobn_forward(x, domain_index, params, domain_num):
    """Forward pass matching DN_Dis_one_hot_woBN.forward.

    x:             (B, nz, 1, 1) float32 (NCHW, spatial dims must be 1)
    domain_index:  (B, 1) integer
    returns:       (B, 1) float32 in (0, 1)
    """
    B, nz, H, W = x.shape
    assert H == 1 and W == 1, (
        "nnSqueeze + Linear(nh, 1) in the reference module requires "
        "spatial dims of size 1")

    w1x, w1d, b1, w2, b2, w3, b3, w4, b4 = params

    x_flat = x.reshape(B, nz).astype(jnp.float32)
    dom = domain_index.reshape(B, 1).astype(jnp.int32)

    TB, B_pad = _batch_tiling(B)
    if B_pad != B:
        x_flat = jnp.pad(x_flat, ((0, B_pad - B), (0, 0)))
        dom = jnp.pad(dom, ((0, B_pad - B), (0, 0)))
    nb = B_pad // TB

    # Pad domain-embedding rows to a bf16-packing-friendly sublane count
    # (padded rows are zero and never selected by the one-hot).
    DPAD = max(16, -(-domain_num // 16) * 16)
    if w1d.shape[0] != DPAD:
        w1d = jnp.pad(w1d, ((0, DPAD - w1d.shape[0]), (0, 0)))

    b4 = jnp.reshape(b4, (1,)).astype(jnp.float32)

    # Advisory cost estimate (tiny kernel -> help XLA schedule around it).
    weight_bytes = sum(int(a.size) * a.dtype.itemsize
                       for a in (w1x, w1d, b1, w2, b2, w3, b3, w4, b4))
    flops = 2 * B_pad * NH * (nz + DPAD + NH + NH + 1)
    bytes_accessed = int(x_flat.size) * 4 + int(dom.size) * 4 + B_pad * 4 + weight_bytes

    out = pl.pallas_call(
        _make_kernel(),
        out_shape=jax.ShapeDtypeStruct((nb, 1, TB), jnp.float32),
        grid=(nb,),
        in_specs=[
            pl.BlockSpec((TB, nz), lambda i: (i, 0)),            # x tile
            pl.BlockSpec((TB, 1), lambda i: (i, 0)),             # domain idx
            pl.BlockSpec((nz, NH), lambda i: (0, 0)),            # w1x (resident)
            pl.BlockSpec((DPAD, NH), lambda i: (0, 0)),          # w1d (resident)
            pl.BlockSpec((1, NH), lambda i: (0, 0)),             # b1
            pl.BlockSpec((NH, NH), lambda i: (0, 0)),            # w2
            pl.BlockSpec((1, NH), lambda i: (0, 0)),             # b2
            pl.BlockSpec((NH, NH), lambda i: (0, 0)),            # w3
            pl.BlockSpec((1, NH), lambda i: (0, 0)),             # b3
            pl.BlockSpec((1, NH), lambda i: (0, 0)),             # w4 (row)
            pl.BlockSpec(memory_space=pltpu.MemorySpace.SMEM),   # b4 scalar
        ],
        out_specs=pl.BlockSpec((1, 1, TB), lambda i: (i, 0, 0)),
        compiler_params=pltpu.CompilerParams(
            dimension_semantics=("parallel",),
            vmem_limit_bytes=32 * 1024 * 1024,
        ),
        cost_estimate=pl.CostEstimate(
            flops=int(flops),
            transcendentals=int(B_pad),
            bytes_accessed=int(bytes_accessed)),
    )(x_flat, dom, w1x, w1d, b1, w2, b2, w3, b3, w4, b4)

    return out.reshape(B_pad, 1)[:B]


def init_params(key, nz, domain_num, nh=NH):
    """PyTorch-style uniform init (+-1/sqrt(fan_in)).

    Weights are stored transposed (in, out) and in bf16 (f32 accumulation in
    kernel); biases stay f32.  w1 is split into the x block and the one-hot
    block to match torch.cat((x, one_hot), dim=1)."""
    nin = nz + domain_num
    ks = jax.random.split(key, 8)

    def lin(kw, kb, fan_in, fan_out):
        bound = 1.0 / float(fan_in) ** 0.5
        w = jax.random.uniform(kw, (fan_in, fan_out), jnp.float32, -bound, bound)
        b = jax.random.uniform(kb, (1, fan_out), jnp.float32, -bound, bound)
        return w, b

    w1, b1 = lin(ks[0], ks[1], nin, nh)   # Conv2d(nin, nh, 1) as matmul
    w2, b2 = lin(ks[2], ks[3], nh, nh)    # Conv2d(nh, nh, 1)
    w3, b3 = lin(ks[4], ks[5], nh, nh)    # Conv2d(nh, nh, 1)
    w4, b4 = lin(ks[6], ks[7], nh, 1)     # Linear(nh, 1)

    w1x = w1[:nz].astype(jnp.bfloat16)          # rows for x channels
    w1d = w1[nz:].astype(jnp.bfloat16)          # rows for one-hot channels
    w4_row = w4.T.astype(jnp.bfloat16)          # (1, nh)
    return (w1x, w1d, b1,
            w2.astype(jnp.bfloat16), b2,
            w3.astype(jnp.bfloat16), b3,
            w4_row, b4.reshape(1))


def reference_forward(x, domain_index, params, domain_num):
    """Pure-JAX reference mirroring the kernel math (bf16 weights/activations,
    f32 accumulation)."""
    B, nz, H, W = x.shape
    w1x, w1d, b1, w2, b2, w3, b3, w4, b4 = params
    x_flat = x.reshape(B, nz)
    oh = jax.nn.one_hot(domain_index.reshape(-1).astype(jnp.int32),
                        domain_num, dtype=jnp.float32)

    def lrelu(v):
        return jnp.maximum(v, NEG_SLOPE * v)

    def dot_bf16(a, w):
        return jnp.dot(a.astype(jnp.bfloat16), w,
                       preferred_element_type=jnp.float32)

    h = dot_bf16(x_flat, w1x) + jnp.dot(oh, w1d.astype(jnp.float32)) + b1
    h = lrelu(h)
    h = lrelu(dot_bf16(h, w2) + b2)
    h = lrelu(dot_bf16(h, w3) + b3)
    logit = dot_bf16(h, w4.T) + b4.reshape(1, 1)
    return jax.nn.sigmoid(logit)


if __name__ == "__main__":
    nz, domain_num = 32, 4
    H = W = 1

    key = jax.random.PRNGKey(0)
    kx, kd, kp, kx2, kd2 = jax.random.split(key, 5)
    params = init_params(kp, nz, domain_num)

    # --- small batch (single tile path) ---
    B = 2
    x = jax.random.normal(kx, (B, nz, H, W), jnp.float32)
    domain_index = jax.random.randint(kd, (B, 1), 0, domain_num, dtype=jnp.int32)
    out = dn_dis_one_hot_wobn_forward(x, domain_index, params, domain_num)
    out = jax.block_until_ready(out)
    ref = reference_forward(x, domain_index, params, domain_num)
    assert out.shape == (B, 1), out.shape
    assert bool(jnp.all(jnp.isfinite(out)))
    assert bool(jnp.allclose(out, ref, atol=1e-3)), (out, ref)

    # --- medium batch (two-tile / padded path, exercises the grid) ---
    B2 = 200
    x2 = jax.random.normal(kx2, (B2, nz, H, W), jnp.float32)
    dom2 = jax.random.randint(kd2, (B2, 1), 0, domain_num, dtype=jnp.int32)
    out2 = dn_dis_one_hot_wobn_forward(x2, dom2, params, domain_num)
    out2 = jax.block_until_ready(out2)
    ref2 = reference_forward(x2, dom2, params, domain_num)
    assert out2.shape == (B2, 1), out2.shape
    assert bool(jnp.all(jnp.isfinite(out2)))
    assert bool(jnp.allclose(out2, ref2, atol=1e-3))

    print("KERNEL_OK")
</pallas_src>

<mosaic_0001>
module attributes {stable_mosaic.version = 11 : i64} {
  func.func @kernel(%arg0: i32, %arg1: memref<16x32xf32, #tpu.memory_space<vmem>>, %arg2: memref<16x1xi32, #tpu.memory_space<vmem>>, %arg3: memref<32x512xbf16, #tpu.memory_space<vmem>>, %arg4: memref<16x512xbf16, #tpu.memory_space<vmem>>, %arg5: memref<1x512xf32, #tpu.memory_space<vmem>>, %arg6: memref<512x512xbf16, #tpu.memory_space<vmem>>, %arg7: memref<1x512xf32, #tpu.memory_space<vmem>>, %arg8: memref<512x512xbf16, #tpu.memory_space<vmem>>, %arg9: memref<1x512xf32, #tpu.memory_space<vmem>>, %arg10: memref<1x512xbf16, #tpu.memory_space<vmem>>, %arg11: memref<1xf32, #tpu.memory_space<smem>>, %arg12: memref<1x1x16xf32, #tpu.memory_space<vmem>>) attributes {dimension_semantics = [#tpu.dimension_semantics<parallel>], iteration_bounds = array<i64: 1>, scalar_prefetch = 0 : i64, scratch_operands = 0 : i64, tpu.core_type = #tpu.core_type<tc>, window_params = [{transform_indices = @transform_0, window_bounds = array<i64: 16, 32>}, {transform_indices = @transform_1, window_bounds = array<i64: 16, 1>}, {pipeline_mode = #tpu.pipeline_mode<synchronous>, transform_indices = @transform_2, window_bounds = array<i64: 32, 512>}, {pipeline_mode = #tpu.pipeline_mode<synchronous>, transform_indices = @transform_3, window_bounds = array<i64: 16, 512>}, {pipeline_mode = #tpu.pipeline_mode<synchronous>, transform_indices = @transform_4, window_bounds = array<i64: 1, 512>}, {pipeline_mode = #tpu.pipeline_mode<synchronous>, transform_indices = @transform_5, window_bounds = array<i64: 512, 512>}, {pipeline_mode = #tpu.pipeline_mode<synchronous>, transform_indices = @transform_6, window_bounds = array<i64: 1, 512>}, {pipeline_mode = #tpu.pipeline_mode<synchronous>, transform_indices = @transform_7, window_bounds = array<i64: 512, 512>}, {pipeline_mode = #tpu.pipeline_mode<synchronous>, transform_indices = @transform_8, window_bounds = array<i64: 1, 512>}, {pipeline_mode = #tpu.pipeline_mode<synchronous>, transform_indices = @transform_9, window_bounds = array<i64: 1, 512>}, {transform_indices = @transform_10, window_bounds = array<i64: 1>}, {transform_indices = @transform_11, window_bounds = array<i64: 1, 1, 16>}]} {
    %c0 = arith.constant 0 : index
    %c0_0 = arith.constant 0 : index
    %0 = vector.load %arg1[%c0, %c0_0] : memref<16x32xf32, #tpu.memory_space<vmem>>, vector<16x32xf32>
    %1 = arith.truncf %0 : vector<16x32xf32> to vector<16x32xbf16>
    %c0_1 = arith.constant 0 : index
    %c0_2 = arith.constant 0 : index
    %2 = vector.load %arg3[%c0_1, %c0_2] : memref<32x512xbf16, #tpu.memory_space<vmem>>, vector<32x512xbf16>
    %cst = arith.constant dense<0.000000e+00> : vector<16x512xf32>
    %3 = tpu.matmul %1, %2, %cst {dimension_numbers = #tpu.dot_dimension_numbers<[1], [0], [0], [1], [0, 0, 1, 1], [], []>} : vector<16x32xbf16>, vector<32x512xbf16>, vector<16x512xf32> -> vector<16x512xf32>
    %4 = tpu.iota {dimensions = array<i32: 1>} : vector<16x16xi32>
    %c0_3 = arith.constant 0 : index
    %c0_4 = arith.constant 0 : index
    %5 = vector.load %arg2[%c0_3, %c0_4] : memref<16x1xi32, #tpu.memory_space<vmem>>, vector<16x1xi32>
    %6 = vector.broadcast %5 : vector<16x1xi32> to vector<16x16xi32>
    %7 = arith.cmpi eq, %4, %6 : vector<16x16xi32>
    %8 = arith.extui %7 : vector<16x16xi1> to vector<16x16xi32>
    %9 = arith.sitofp %8 : vector<16x16xi32> to vector<16x16xf32>
    %10 = arith.truncf %9 : vector<16x16xf32> to vector<16x16xbf16>
    %c0_5 = arith.constant 0 : index
    %c0_6 = arith.constant 0 : index
    %11 = vector.load %arg4[%c0_5, %c0_6] : memref<16x512xbf16, #tpu.memory_space<vmem>>, vector<16x512xbf16>
    %cst_7 = arith.constant dense<0.000000e+00> : vector<16x512xf32>
    %12 = tpu.matmul %10, %11, %cst_7 {dimension_numbers = #tpu.dot_dimension_numbers<[1], [0], [0], [1], [0, 0, 1, 1], [], []>} : vector<16x16xbf16>, vector<16x512xbf16>, vector<16x512xf32> -> vector<16x512xf32>
    %13 = arith.addf %3, %12 : vector<16x512xf32>
    %c0_8 = arith.constant 0 : index
    %c0_9 = arith.constant 0 : index
    %14 = vector.load %arg5[%c0_8, %c0_9] : memref<1x512xf32, #tpu.memory_space<vmem>>, vector<1x512xf32>
    %15 = vector.broadcast %14 : vector<1x512xf32> to vector<16x512xf32>
    %16 = arith.addf %13, %15 : vector<16x512xf32>
    %cst_10 = arith.constant 0.00999999977 : f32
    %17 = vector.broadcast %cst_10 : f32 to vector<16x512xf32>
    %18 = arith.mulf %17, %16 : vector<16x512xf32>
    %19 = arith.maximumf %16, %18 : vector<16x512xf32>
    %20 = arith.truncf %19 : vector<16x512xf32> to vector<16x512xbf16>
    %c0_11 = arith.constant 0 : index
    %c0_12 = arith.constant 0 : index
    %21 = vector.load %arg6[%c0_11, %c0_12] : memref<512x512xbf16, #tpu.memory_space<vmem>>, vector<512x512xbf16>
    %cst_13 = arith.constant dense<0.000000e+00> : vector<16x512xf32>
    %22 = tpu.matmul %20, %21, %cst_13 {dimension_numbers = #tpu.dot_dimension_numbers<[1], [0], [0], [1], [0, 0, 1, 1], [], []>} : vector<16x512xbf16>, vector<512x512xbf16>, vector<16x512xf32> -> vector<16x512xf32>
    %c0_14 = arith.constant 0 : index
    %c0_15 = arith.constant 0 : index
    %23 = vector.load %arg7[%c0_14, %c0_15] : memref<1x512xf32, #tpu.memory_space<vmem>>, vector<1x512xf32>
    %24 = vector.broadcast %23 : vector<1x512xf32> to vector<16x512xf32>
    %25 = arith.addf %22, %24 : vector<16x512xf32>
    %cst_16 = arith.constant 0.00999999977 : f32
    %26 = vector.broadcast %cst_16 : f32 to vector<16x512xf32>
    %27 = arith.mulf %26, %25 : vector<16x512xf32>
    %28 = arith.maximumf %25, %27 : vector<16x512xf32>
    %29 = arith.truncf %28 : vector<16x512xf32> to vector<16x512xbf16>
    %c0_17 = arith.constant 0 : index
    %c0_18 = arith.constant 0 : index
    %30 = vector.load %arg8[%c0_17, %c0_18] : memref<512x512xbf16, #tpu.memory_space<vmem>>, vector<512x512xbf16>
    %cst_19 = arith.constant dense<0.000000e+00> : vector<16x512xf32>
    %31 = tpu.matmul %29, %30, %cst_19 {dimension_numbers = #tpu.dot_dimension_numbers<[1], [0], [0], [1], [0, 0, 1, 1], [], []>} : vector<16x512xbf16>, vector<512x512xbf16>, vector<16x512xf32> -> vector<16x512xf32>
    %c0_20 = arith.constant 0 : index
    %c0_21 = arith.constant 0 : index
    %32 = vector.load %arg9[%c0_20, %c0_21] : memref<1x512xf32, #tpu.memory_space<vmem>>, vector<1x512xf32>
    %33 = vector.broadcast %32 : vector<1x512xf32> to vector<16x512xf32>
    %34 = arith.addf %31, %33 : vector<16x512xf32>
    %cst_22 = arith.constant 0.00999999977 : f32
    %35 = vector.broadcast %cst_22 : f32 to vector<16x512xf32>
    %36 = arith.mulf %35, %34 : vector<16x512xf32>
    %37 = arith.maximumf %34, %36 : vector<16x512xf32>
    %c0_23 = arith.constant 0 : index
    %c0_24 = arith.constant 0 : index
    %38 = vector.load %arg10[%c0_23, %c0_24] : memref<1x512xbf16, #tpu.memory_space<vmem>>, vector<1x512xbf16>
    %39 = arith.truncf %37 : vector<16x512xf32> to vector<16x512xbf16>
    %cst_25 = arith.constant dense<0.000000e+00> : vector<1x16xf32>
    %40 = tpu.matmul %38, %39, %cst_25 {dimension_numbers = #tpu.dot_dimension_numbers<[1], [1], [0], [0], [0, 0, 1, 0], [], []>} : vector<1x512xbf16>, vector<16x512xbf16>, vector<1x16xf32> -> vector<1x16xf32>
    %c0_26 = arith.constant 0 : index
    %41 = memref.load %arg11[%c0_26] : memref<1xf32, #tpu.memory_space<smem>>
    %42 = vector.broadcast %41 : f32 to vector<1x16xf32>
    %43 = arith.addf %40, %42 : vector<1x16xf32>
    %44 = arith.negf %43 : vector<1x16xf32>
    %45 = math.exp %44 : vector<1x16xf32>
    %cst_27 = arith.constant 1.000000e+00 : f32
    %46 = vector.broadcast %cst_27 : f32 to vector<1x16xf32>
    %47 = arith.addf %46, %45 : vector<1x16xf32>
    %48 = arith.divf %46, %47 : vector<1x16xf32>
    %49 = vector.shape_cast %48 : vector<1x16xf32> to vector<1x1x16xf32>
    %c0_28 = arith.constant 0 : index
    %c0_29 = arith.constant 0 : index
    %c0_30 = arith.constant 0 : index
    %50 = vector.load %arg12[%c0_28, %c0_29, %c0_30] : memref<1x1x16xf32, #tpu.memory_space<vmem>>, vector<1x1x16xf32>
    tpu.vector_store %arg12[%c0_28, %c0_29, %c0_30], %49 {strides = array<i32>} : memref<1x1x16xf32, #tpu.memory_space<vmem>>, vector<1x1x16xf32>,
    return
  }
  func.func @transform_0(%arg0: i32) -> (i32, i32) {
    %c0_i32 = arith.constant 0 : i32
    %c0_i32_0 = arith.constant 0 : i32
    return %arg0, %c0_i32 : i32, i32
  }
  func.func @transform_1(%arg0: i32) -> (i32, i32) {
    %c0_i32 = arith.constant 0 : i32
    %c0_i32_0 = arith.constant 0 : i32
    return %arg0, %c0_i32 : i32, i32
  }
  func.func @transform_2(%arg0: i32) -> (i32, i32) {
    %c0_i32 = arith.constant 0 : i32
    %c0_i32_0 = arith.constant 0 : i32
    %c0_i32_1 = arith.constant 0 : i32
    return %c0_i32, %c0_i32_0 : i32, i32
  }
  func.func @transform_3(%arg0: i32) -> (i32, i32) {
    %c0_i32 = arith.constant 0 : i32
    %c0_i32_0 = arith.constant 0 : i32
    %c0_i32_1 = arith.constant 0 : i32
    return %c0_i32, %c0_i32_0 : i32, i32
  }
  func.func @transform_4(%arg0: i32) -> (i32, i32) {
    %c0_i32 = arith.constant 0 : i32
    %c0_i32_0 = arith.constant 0 : i32
    %c0_i32_1 = arith.constant 0 : i32
    return %c0_i32, %c0_i32_0 : i32, i32
  }
  func.func @transform_5(%arg0: i32) -> (i32, i32) {
    %c0_i32 = arith.constant 0 : i32
    %c0_i32_0 = arith.constant 0 : i32
    %c0_i32_1 = arith.constant 0 : i32
    return %c0_i32, %c0_i32_0 : i32, i32
  }
  func.func @transform_6(%arg0: i32) -> (i32, i32) {
    %c0_i32 = arith.constant 0 : i32
    %c0_i32_0 = arith.constant 0 : i32
    %c0_i32_1 = arith.constant 0 : i32
    return %c0_i32, %c0_i32_0 : i32, i32
  }
  func.func @transform_7(%arg0: i32) -> (i32, i32) {
    %c0_i32 = arith.constant 0 : i32
    %c0_i32_0 = arith.constant 0 : i32
    %c0_i32_1 = arith.constant 0 : i32
    return %c0_i32, %c0_i32_0 : i32, i32
  }
  func.func @transform_8(%arg0: i32) -> (i32, i32) {
    %c0_i32 = arith.constant 0 : i32
    %c0_i32_0 = arith.constant 0 : i32
    %c0_i32_1 = arith.constant 0 : i32
    return %c0_i32, %c0_i32_0 : i32, i32
  }
  func.func @transform_9(%arg0: i32) -> (i32, i32) {
    %c0_i32 = arith.constant 0 : i32
    %c0_i32_0 = arith.constant 0 : i32
    %c0_i32_1 = arith.constant 0 : i32
    return %c0_i32, %c0_i32_0 : i32, i32
  }
  func.func @transform_10(%arg0: i32) -> i32 {
    %c0_i32 = arith.constant 0 : i32
    %c0_i32_0 = arith.constant 0 : i32
    return %c0_i32 : i32
  }
  func.func @transform_11(%arg0: i32) -> (i32, i32, i32) {
    %c0_i32 = arith.constant 0 : i32
    %c0_i32_0 = arith.constant 0 : i32
    %c0_i32_1 = arith.constant 0 : i32
    return %arg0, %c0_i32, %c0_i32_0 : i32, i32, i32
  }
}

</mosaic_0001>

<llo_original>
// kernel: tpu_custom_call.1
$region0: #{tpu_custom_call.1}
  #allocation0 [shape = 'u32[]', space=smem, size = 0x4, offset = 0x4, fixed_abs, tag = 'smem constant byte address 0x4 - core index']
  #allocation1 [shape = 'u32[144,128]{1,0:T(1,128)}', space=vmem, size = 0x12000, scoped, tag = 'internal scratch']
  #allocation2 [shape = 'f32[1]{0:T(128)S(6)}', space=smem, size = 0x200, scoped, tag = 'scoped memory for tpu_custom_call.1']
  %s0 = inlined_call_operand.hbm [shape: f32[16,32], index: 0, kind: input, shape index: {}]
  %s1 = inlined_call_operand.vmem [shape: s32[16,1], index: 1, kind: input, shape index: {}]
  %s2 = inlined_call_operand.hbm [shape: bf16[32,512], index: 2, kind: input, shape index: {}]
  %s3 = inlined_call_operand.vmem [shape: bf16[16,512], index: 3, kind: input, shape index: {}]
  %s4 = inlined_call_operand.hbm [shape: f32[1,512], index: 4, kind: input, shape index: {}]
  %s5 = inlined_call_operand.hbm [shape: bf16[512,512], index: 5, kind: input, shape index: {}]
  %s6 = inlined_call_operand.vmem [shape: f32[1,512], index: 6, kind: input, shape index: {}]
  %s7 = inlined_call_operand.hbm [shape: bf16[512,512], index: 7, kind: input, shape index: {}]
  %s8 = inlined_call_operand.vmem [shape: f32[1,512], index: 8, kind: input, shape index: {}]
  %s9 = inlined_call_operand.vmem [shape: bf16[1,512], index: 9, kind: input, shape index: {}]
  %s10 = inlined_call_operand.<no memory space> [shape: f32[1], index: 10, kind: input, shape index: {}]
  %s11 = inlined_call_operand.hbm [shape: f32[1,1,16], index: 11, kind: output, shape index: {}]
  %s12 = sld [smem:[#allocation0]]
  $region74: #{tpu_custom_call.1} parent=0
    _
  %s14 = ssub.s32 1, %s12
  %s15 = scalar_select 0, %s14, %s12
  %16 = sst [smem:[#allocation2]] %s10
  $region1: #{tpu_custom_call.1} parent=0
    #allocation3 [shape = 'u8[8192]{0}', space=vmem, size = 0x2000, scoped, tag = 'input window, operand 0, single buffered']
    #allocation4 [shape = 's32[1]{0}', space=sflag, size = 0x4, scoped, tag = 'scoped memory for tpu_custom_call.1']
    #allocation5 [shape = 's32[1]{0}', space=sflag, size = 0x4, scoped, tag = 'scoped memory for tpu_custom_call.1']
    #allocation6 [shape = 'u8[32768]{0}', space=vmem, size = 0x8000, scoped, tag = 'input window, operand 2, single buffered']
    #allocation7 [shape = 's32[1]{0}', space=sflag, size = 0x4, scoped, tag = 'scoped memory for tpu_custom_call.1']
    #allocation8 [shape = 'u8[2048]{0}', space=vmem, size = 0x800, scoped, tag = 'input window, operand 4, single buffered']
    #allocation9 [shape = 'u8[524288]{0}', space=vmem, size = 0x80000, scoped, tag = 'input window, operand 5, single buffered']
    #allocation10 [shape = 's32[1]{0}', space=sflag, size = 0x4, scoped, tag = 'scoped memory for tpu_custom_call.1']
    #allocation11 [shape = 'u8[524288]{0}', space=vmem, size = 0x80000, scoped, tag = 'input window, operand 7, single buffered']
    #allocation12 [shape = 'u8[512]{0}', space=vmem, size = 0x400, scoped, tag = 'output window, operand 0, single buffered']
    %17 = vsyncpa [#allocation4], 0
    %18 = vsyncpa [#allocation7], 0
    %19 = vsyncpa [#allocation10], 0
    %20 = vsyncpa [#allocation5], 0
    // Predicated region
    $region2: #{tpu_custom_call.1} parent=1 // pred_check
      _
    $region3: #{tpu_custom_call.1} parent=1 // pred_check_branch
      %22 = sbr.rel (0) target = $region5
    $region4: #{tpu_custom_call.1} parent=1 // pred_region
      %s24 = ssub.s32 256, 256
      %25 = vsyncadd [#allocation4], %s24
      %s26 = sshll.u32 [#allocation3], 4
      %s27 = int_to_ptr.vmem [resolvable:$true] %s26
      %32 = dma.hbm_to_vmem [thread:$0]  %s0, 256, %s27, [#allocation4], 128, 128, 8
    $region5: #{tpu_custom_call.1} parent=1 // pred_fallthru
      _
    // Predicated region
    $region6: #{tpu_custom_call.1} parent=1 // pred_check
      _
    $region7: #{tpu_custom_call.1} parent=1 // pred_check_branch
      %34 = sbr.rel (0) target = $region9
    $region8: #{tpu_custom_call.1} parent=1 // pred_region
      _
    $region9: #{tpu_custom_call.1} parent=1 // pred_fallthru
      _
    // Predicated region
    $region10: #{tpu_custom_call.1} parent=1 // pred_check
      _
    $region11: #{tpu_custom_call.1} parent=1 // pred_check_branch
      %36 = sbr.rel (0) target = $region13
    $region12: #{tpu_custom_call.1} parent=1 // pred_region
      %s38 = ssub.s32 1024, 1024
      %39 = vsyncadd [#allocation7], %s38
      %s40 = sshll.u32 [#allocation6], 4
      %s41 = int_to_ptr.vmem [resolvable:$true] %s40
      %46 = dma.hbm_to_vmem [thread:$0]  %s2, 1024, %s41, [#allocation7], 256, 256, 16
    $region13: #{tpu_custom_call.1} parent=1 // pred_fallthru
      _
    // Predicated region
    $region14: #{tpu_custom_call.1} parent=1 // pred_check
      _
    $region15: #{tpu_custom_call.1} parent=1 // pred_check_branch
      %48 = sbr.rel (0) target = $region17
    $region16: #{tpu_custom_call.1} parent=1 // pred_region
      _
    $region17: #{tpu_custom_call.1} parent=1 // pred_fallthru
      _
    // Predicated region
    $region18: #{tpu_custom_call.1} parent=1 // pred_check
      _
    $region19: #{tpu_custom_call.1} parent=1 // pred_check_branch
      %50 = sbr.rel (0) target = $region21
    $region20: #{tpu_custom_call.1} parent=1 // pred_region
      %s52 = ssub.s32 64, 64
      %53 = vsyncadd [#allocation7], %s52
      %s55 = sshll.u32 [#allocation8], 4
      %s56 = int_to_ptr.vmem [resolvable:$true] %s55
      %58 = dma.hbm_to_vmem [thread:$0]  %s4, 64, %s56, [#allocation7]
    $region21: #{tpu_custom_call.1} parent=1 // pred_fallthru
      _
    // Predicated region
    $region22: #{tpu_custom_call.1} parent=1 // pred_check
      _
    $region23: #{tpu_custom_call.1} parent=1 // pred_check_branch
      %60 = sbr.rel (0) target = $region25
    $region24: #{tpu_custom_call.1} parent=1 // pred_region
      %s62 = ssub.s32 16384, 16384
      %63 = vsyncadd [#allocation10], %s62
      %s64 = sshll.u32 [#allocation9], 4
      %s65 = int_to_ptr.vmem [resolvable:$true] %s64
      %70 = dma.hbm_to_vmem [thread:$0]  %s5, 16384, %s65, [#allocation10], 256, 256, 16
    $region25: #{tpu_custom_call.1} parent=1 // pred_fallthru
      _
    // Predicated region
    $region26: #{tpu_custom_call.1} parent=1 // pred_check
      _
    $region27: #{tpu_custom_call.1} parent=1 // pred_check_branch
      %72 = sbr.rel (0) target = $region29
    $region28: #{tpu_custom_call.1} parent=1 // pred_region
      _
    $region29: #{tpu_custom_call.1} parent=1 // pred_fallthru
      _
    // Predicated region
    $region30: #{tpu_custom_call.1} parent=1 // pred_check
      _
    $region31: #{tpu_custom_call.1} parent=1 // pred_check_branch
      %74 = sbr.rel (0) target = $region33
    $region32: #{tpu_custom_call.1} parent=1 // pred_region
      %s76 = ssub.s32 16384, 16384
      %77 = vsyncadd [#allocation10], %s76
      %s78 = sshll.u32 [#allocation11], 4
      %s79 = int_to_ptr.vmem [resolvable:$true] %s78
      %84 = dma.hbm_to_vmem [thread:$0]  %s7, 16384, %s79, [#allocation10], 256, 256, 16
    $region33: #{tpu_custom_call.1} parent=1 // pred_fallthru
      _
    // Predicated region
    $region34: #{tpu_custom_call.1} parent=1 // pred_check
      _
    $region35: #{tpu_custom_call.1} parent=1 // pred_check_branch
      %86 = sbr.rel (0) target = $region37
    $region36: #{tpu_custom_call.1} parent=1 // pred_region
      _
    $region37: #{tpu_custom_call.1} parent=1 // pred_fallthru
      _
    // Predicated region
    $region38: #{tpu_custom_call.1} parent=1 // pred_check
      _
    $region39: #{tpu_custom_call.1} parent=1 // pred_check_branch
      %88 = sbr.rel (0) target = $region41
    $region40: #{tpu_custom_call.1} parent=1 // pred_region
      _
    $region41: #{tpu_custom_call.1} parent=1 // pred_fallthru
      _
    // Predicated region
    $region42: #{tpu_custom_call.1} parent=1 // pred_check
      _
    $region43: #{tpu_custom_call.1} parent=1 // pred_check_branch
      %90 = sbr.rel (0) target = $region45
    $region44: #{tpu_custom_call.1} parent=1 // pred_region
      _
    $region45: #{tpu_custom_call.1} parent=1 // pred_fallthru
      _
    // Predicated region
    $region46: #{tpu_custom_call.1} parent=1 // pred_check
      _
    $region47: #{tpu_custom_call.1} parent=1 // pred_check_branch
      %92 = sbr.rel (0) target = $region49
    $region48: #{tpu_custom_call.1} parent=1 // pred_region
      %93 = dma.done [#allocation4], 256
    $region49: #{tpu_custom_call.1} parent=1 // pred_fallthru
      _
    // Predicated region
    $region50: #{tpu_custom_call.1} parent=1 // pred_check
      _
    $region51: #{tpu_custom_call.1} parent=1 // pred_check_branch
      %95 = sbr.rel (0) target = $region53
    $region52: #{tpu_custom_call.1} parent=1 // pred_region
      %96 = dma.done [#allocation7], 1024
    $region53: #{tpu_custom_call.1} parent=1 // pred_fallthru
      _
    // Predicated region
    $region54: #{tpu_custom_call.1} parent=1 // pred_check
      _
    $region55: #{tpu_custom_call.1} parent=1 // pred_check_branch
      %98 = sbr.rel (0) target = $region57
    $region56: #{tpu_custom_call.1} parent=1 // pred_region
      %99 = dma.done [#allocation7], 64
    $region57: #{tpu_custom_call.1} parent=1 // pred_fallthru
      _
    // Predicated region
    $region58: #{tpu_custom_call.1} parent=1 // pred_check
      _
    $region59: #{tpu_custom_call.1} parent=1 // pred_check_branch
      %101 = sbr.rel (0) target = $region61
    $region60: #{tpu_custom_call.1} parent=1 // pred_region
      %102 = dma.done [#allocation10], 16384
    $region61: #{tpu_custom_call.1} parent=1 // pred_fallthru
      _
    // Predicated region
    $region62: #{tpu_custom_call.1} parent=1 // pred_check
      _
    $region63: #{tpu_custom_call.1} parent=1 // pred_check_branch
      %104 = sbr.rel (0) target = $region65
    $region64: #{tpu_custom_call.1} parent=1 // pred_region
      %105 = dma.done [#allocation10], 16384
    $region65: #{tpu_custom_call.1} parent=1 // pred_fallthru
      _
    %v107 = vld [vmem:[#allocation3] sm:$0xff]
    %v108 = vld [vmem:[#allocation3 + $0x8] sm:$0xff]
    %v109 = vpack.c.bf16 %v108, %v107
    %v110 = vld [vmem:[#allocation6] sm:$0xff]
    %v111 = vld [vmem:[#allocation6 + $0x8] sm:$0xff]
    %v112 = vld [vmem:[#allocation6 + $0x10] sm:$0xff]
    %v113 = vld [vmem:[#allocation6 + $0x18] sm:$0xff]
    %v114 = vld [vmem:[#allocation6 + $0x20] sm:$0xff]
    %v115 = vld [vmem:[#allocation6 + $0x28] sm:$0xff]
    %v116 = vld [vmem:[#allocation6 + $0x30] sm:$0xff]
    %v117 = vld [vmem:[#allocation6 + $0x38] sm:$0xff]
    %v118 = vlaneseq
    %v119 = vand.u32 %v118, 127
    %v120 = vld [vmem:[%s1] sm:$0xff]
    %v121 = vld [vmem:[%s1 + $0x8] sm:$0xff]
    %122 = vset.pattern.permute.xlu0 0
    %123 = vperm.xlu0 %122, %v120
    %v124 = vpop.permute.xlu0 %123
    %125 = vset.pattern.permute.xlu0 0
    %126 = vperm.xlu0 %125, %v121
    %v127 = vpop.permute.xlu0 %126
    %vm128 = vcmp.eq.s32.totalorder %v119, %v124
    %vm129 = vcmp.eq.s32.totalorder %v119, %v127
    %v130 = vsel %vm128, 1, 0
    %v131 = vsel %vm129, 1, 0
    %v132 = vcvt.s32.f32 %v130
    %v133 = vcvt.s32.f32 %v131
    %v134 = vpack.c.bf16 %v133, %v132
    %v135 = vld [vmem:[%s3] sm:$0xff]
    %v136 = vld [vmem:[%s3 + $0x8] sm:$0xff]
    %v137 = vld [vmem:[%s3 + $0x10] sm:$0xff]
    %v138 = vld [vmem:[%s3 + $0x18] sm:$0xff]
    %v143 = vunpack.c.l.b16 %v135
    %v144 = vunpack.c.h.b16 %v135
    %v145 = vunpack.c.l.b16 %v136
    %v146 = vunpack.c.h.b16 %v136
    %v147 = vunpack.c.l.b16 %v137
    %v148 = vunpack.c.h.b16 %v137
    %v149 = vunpack.c.l.b16 %v138
    %v150 = vunpack.c.h.b16 %v138
    %v151 = vpack.c.b16 %v147, %v143
    %v152 = vpack.c.b16 %v148, %v144
    %v153 = vpack.c.b16 %v149, %v145
    %v154 = vpack.c.b16 %v150, %v146
    %vm159 = vcmask 130048
    %v161 = vsel %vm159, %v134, 0
    %163 = vmatprep.subr.bf16.mxu0 %v152
    %164 = vmatpush1.bf16.msra.mxu0 %v151
    %165 = vmatprep.subr.bf16.mxu0 0
    %166 = vmatpush1.bf16.msra.mxu0 0
    %167 = vmatprep.subr.bf16.mxu0 0
    %168 = vmatpush1.bf16.msra.mxu0 0
    %169 = vmatprep.subr.bf16.mxu0 0
    %170 = vmatpush1.bf16.msra.mxu0 0
    %171 = vmatprep.subr.bf16.mxu0 0
    %172 = vmatpush1.bf16.msra.mxu0 0
    %173 = vmatprep.subr.bf16.mxu0 0
    %174 = vmatpush1.bf16.msra.mxu0 0
    %175 = vmatprep.subr.bf16.mxu0 0
    %176 = vmatpush1.bf16.msra.mxu0 0
    %177 = vmatprep.subr.bf16.mxu0 0
    %178 = vmatpush1.bf16.msra.mxu0 0
    %179 = vmatprep.subr.bf16.mxu0 0
    %180 = vmatpush1.bf16.msra.mxu0 0
    %181 = vmatprep.subr.bf16.mxu0 0
    %182 = vmatpush1.bf16.msra.mxu0 0
    %183 = vmatprep.subr.bf16.mxu0 0
    %184 = vmatpush1.bf16.msra.mxu0 0
    %185 = vmatprep.subr.bf16.mxu0 0
    %186 = vmatpush1.bf16.msra.mxu0 0
    %187 = vmatprep.subr.bf16.mxu0 0
    %188 = vmatpush1.bf16.msra.mxu0 0
    %189 = vmatprep.subr.bf16.mxu0 0
    %190 = vmatpush1.bf16.msra.mxu0 0
    %191 = vmatprep.subr.bf16.mxu0 0
    %192 = vmatpush1.bf16.msra.mxu0 0
    %193 = vmatprep.subr.bf16.mxu0 0
    %194 = vmatpush1.bf16.msra.mxu0 0
    %195 = vmatprep.mubr.bf16.mxu0 0
    %196 = vmatmul.mubr.bf16.gmra.mrb[0].mxu0 %v161
    %v197 = vpop.f32.mrb[0].mxu0
    %v198 = vadd.f32 0.0, %v197
    %v199 = vpop.f32.mrb[0].mxu0
    %v200 = vadd.f32 0.0, %v199
    %v201 = vpop.f32.mrb[0].mxu0
    %v202 = vadd.f32 0.0, %v201
    %v203 = vpop.f32.mrb[0].mxu0
    %v204 = vadd.f32 0.0, %v203
    %205 = vdwg.mxu0
    %206 = vmatprep.subr.bf16.mxu0 %v154
    %207 = vmatpush1.bf16.msra.mxu0 %v153
    %208 = vmatprep.subr.bf16.mxu0 0
    %209 = vmatpush1.bf16.msra.mxu0 0
    %210 = vmatprep.subr.bf16.mxu0 0
    %211 = vmatpush1.bf16.msra.mxu0 0
    %212 = vmatprep.subr.bf16.mxu0 0
    %213 = vmatpush1.bf16.msra.mxu0 0
    %214 = vmatprep.subr.bf16.mxu0 0
    %215 = vmatpush1.bf16.msra.mxu0 0
    %216 = vmatprep.subr.bf16.mxu0 0
    %217 = vmatpush1.bf16.msra.mxu0 0
    %218 = vmatprep.subr.bf16.mxu0 0
    %219 = vmatpush1.bf16.msra.mxu0 0
    %220 = vmatprep.subr.bf16.mxu0 0
    %221 = vmatpush1.bf16.msra.mxu0 0
    %222 = vmatprep.subr.bf16.mxu0 0
    %223 = vmatpush1.bf16.msra.mxu0 0
    %224 = vmatprep.subr.bf16.mxu0 0
    %225 = vmatpush1.bf16.msra.mxu0 0
    %226 = vmatprep.subr.bf16.mxu0 0
    %227 = vmatpush1.bf16.msra.mxu0 0
    %228 = vmatprep.subr.bf16.mxu0 0
    %229 = vmatpush1.bf16.msra.mxu0 0
    %230 = vmatprep.subr.bf16.mxu0 0
    %231 = vmatpush1.bf16.msra.mxu0 0
    %232 = vmatprep.subr.bf16.mxu0 0
    %233 = vmatpush1.bf16.msra.mxu0 0
    %234 = vmatprep.subr.bf16.mxu0 0
    %235 = vmatpush1.bf16.msra.mxu0 0
    %236 = vmatprep.subr.bf16.mxu0 0
    %237 = vmatpush1.bf16.msra.mxu0 0
    %238 = vmatprep.mubr.bf16.mxu0 0
    %239 = vmatmul.mubr.bf16.gmra.mrb[0].mxu0 %v161
    %v240 = vpop.f32.mrb[0].mxu0
    %v241 = vadd.f32 0.0, %v240
    %v242 = vpop.f32.mrb[0].mxu0
    %v243 = vadd.f32 0.0, %v242
    %v244 = vpop.f32.mrb[0].mxu0
    %v245 = vadd.f32 0.0, %v244
    %v246 = vpop.f32.mrb[0].mxu0
    %v247 = vadd.f32 0.0, %v246
    %248 = vdwg.mxu0
    %v257 = vunpack.c.l.b16 %v110
    %v258 = vunpack.c.h.b16 %v110
    %v259 = vunpack.c.l.b16 %v111
    %v260 = vunpack.c.h.b16 %v111
    %v261 = vunpack.c.l.b16 %v112
    %v262 = vunpack.c.h.b16 %v112
    %v263 = vunpack.c.l.b16 %v113
    %v264 = vunpack.c.h.b16 %v113
    %v265 = vunpack.c.l.b16 %v114
    %v266 = vunpack.c.h.b16 %v114
    %v267 = vunpack.c.l.b16 %v115
    %v268 = vunpack.c.h.b16 %v115
    %v269 = vunpack.c.l.b16 %v116
    %v270 = vunpack.c.h.b16 %v116
    %v271 = vunpack.c.l.b16 %v117
    %v272 = vunpack.c.h.b16 %v117
    %v273 = vpack.c.b16 %v261, %v257
    %v274 = vpack.c.b16 %v262, %v258
    %v275 = vpack.c.b16 %v263, %v259
    %v276 = vpack.c.b16 %v264, %v260
    %v277 = vpack.c.b16 %v269, %v265
    %v278 = vpack.c.b16 %v270, %v266
    %v279 = vpack.c.b16 %v271, %v267
    %v280 = vpack.c.b16 %v272, %v268
    %vm289 = vcmask 261120
    %v291 = vsel %vm289, %v109, 0
    %293 = vmatprep.subr.bf16.mxu0 %v274
    %294 = vmatpush1.bf16.msra.mxu0 %v273
    %295 = vmatprep.subr.bf16.mxu0 %v278
    %296 = vmatpush1.bf16.msra.mxu0 %v277
    %297 = vmatprep.subr.bf16.mxu0 0
    %298 = vmatpush1.bf16.msra.mxu0 0
    %299 = vmatprep.subr.bf16.mxu0 0
    %300 = vmatpush1.bf16.msra.mxu0 0
    %301 = vmatprep.subr.bf16.mxu0 0
    %302 = vmatpush1.bf16.msra.mxu0 0
    %303 = vmatprep.subr.bf16.mxu0 0
    %304 = vmatpush1.bf16.msra.mxu0 0
    %305 = vmatprep.subr.bf16.mxu0 0
    %306 = vmatpush1.bf16.msra.mxu0 0
    %307 = vmatprep.subr.bf16.mxu0 0
    %308 = vmatpush1.bf16.msra.mxu0 0
    %309 = vmatprep.subr.bf16.mxu0 0
    %310 = vmatpush1.bf16.msra.mxu0 0
    %311 = vmatprep.subr.bf16.mxu0 0
    %312 = vmatpush1.bf16.msra.mxu0 0
    %313 = vmatprep.subr.bf16.mxu0 0
    %314 = vmatpush1.bf16.msra.mxu0 0
    %315 = vmatprep.subr.bf16.mxu0 0
    %316 = vmatpush1.bf16.msra.mxu0 0
    %317 = vmatprep.subr.bf16.mxu0 0
    %318 = vmatpush1.bf16.msra.mxu0 0
    %319 = vmatprep.subr.bf16.mxu0 0
    %320 = vmatpush1.bf16.msra.mxu0 0
    %321 = vmatprep.subr.bf16.mxu0 0
    %322 = vmatpush1.bf16.msra.mxu0 0
    %323 = vmatprep.subr.bf16.mxu0 0
    %324 = vmatpush1.bf16.msra.mxu0 0
    %325 = vmatprep.mubr.bf16.mxu0 0
    %326 = vmatmul.mubr.bf16.gmra.mrb[0].mxu0 %v291
    %v327 = vpop.f32.mrb[0].mxu0
    %v328 = vadd.f32 %v198, %v327
    %v329 = vpop.f32.mrb[0].mxu0
    %v330 = vadd.f32 %v200, %v329
    %v331 = vpop.f32.mrb[0].mxu0
    %v332 = vadd.f32 %v202, %v331
    %v333 = vpop.f32.mrb[0].mxu0
    %v334 = vadd.f32 %v204, %v333
    %335 = vdwg.mxu0
    %336 = vmatprep.subr.bf16.mxu0 %v276
    %337 = vmatpush1.bf16.msra.mxu0 %v275
    %338 = vmatprep.subr.bf16.mxu0 %v280
    %339 = vmatpush1.bf16.msra.mxu0 %v279
    %340 = vmatprep.subr.bf16.mxu0 0
    %341 = vmatpush1.bf16.msra.mxu0 0
    %342 = vmatprep.subr.bf16.mxu0 0
    %343 = vmatpush1.bf16.msra.mxu0 0
    %344 = vmatprep.subr.bf16.mxu0 0
    %345 = vmatpush1.bf16.msra.mxu0 0
    %346 = vmatprep.subr.bf16.mxu0 0
    %347 = vmatpush1.bf16.msra.mxu0 0
    %348 = vmatprep.subr.bf16.mxu0 0
    %349 = vmatpush1.bf16.msra.mxu0 0
    %350 = vmatprep.subr.bf16.mxu0 0
    %351 = vmatpush1.bf16.msra.mxu0 0
    %352 = vmatprep.subr.bf16.mxu0 0
    %353 = vmatpush1.bf16.msra.mxu0 0
    %354 = vmatprep.subr.bf16.mxu0 0
    %355 = vmatpush1.bf16.msra.mxu0 0
    %356 = vmatprep.subr.bf16.mxu0 0
    %357 = vmatpush1.bf16.msra.mxu0 0
    %358 = vmatprep.subr.bf16.mxu0 0
    %359 = vmatpush1.bf16.msra.mxu0 0
    %360 = vmatprep.subr.bf16.mxu0 0
    %361 = vmatpush1.bf16.msra.mxu0 0
    %362 = vmatprep.subr.bf16.mxu0 0
    %363 = vmatpush1.bf16.msra.mxu0 0
    %364 = vmatprep.subr.bf16.mxu0 0
    %365 = vmatpush1.bf16.msra.mxu0 0
    %366 = vmatprep.subr.bf16.mxu0 0
    %367 = vmatpush1.bf16.msra.mxu0 0
    %368 = vmatprep.mubr.bf16.mxu0 0
    %369 = vmatmul.mubr.bf16.gmra.mrb[0].mxu0 %v291
    %v370 = vpop.f32.mrb[0].mxu0
    %v371 = vadd.f32 %v241, %v370
    %v372 = vpop.f32.mrb[0].mxu0
    %v373 = vadd.f32 %v243, %v372
    %v374 = vpop.f32.mrb[0].mxu0
    %v375 = vadd.f32 %v245, %v374
    %v376 = vpop.f32.mrb[0].mxu0
    %v377 = vadd.f32 %v247, %v376
    %378 = vdwg.mxu0
    %v379 = vld [vmem:[#allocation8] sm:$0xf]
    %v381 = vlaneseq
    %v382 = vshrl.u32 %v381, 7
    %v383 = vsub.s32 0, %v382
    %v384 = vrot.slane %v379, %v383
    %v385 = vlaneseq
    %v386 = vshrl.u32 %v385, 7
    %v387 = vsub.s32 1, %v386
    %v388 = vrot.slane %v379, %v387
    %v389 = vlaneseq
    %v390 = vshrl.u32 %v389, 7
    %v391 = vsub.s32 2, %v390
    %v392 = vrot.slane %v379, %v391
    %v393 = vlaneseq
    %v394 = vshrl.u32 %v393, 7
    %v395 = vsub.s32 3, %v394
    %v396 = vrot.slane %v379, %v395
    %v401 = vadd.f32 %v328, %v384
    %v402 = vadd.f32 %v330, %v388
    %v403 = vadd.f32 %v371, %v392
    %v404 = vadd.f32 %v373, %v396
    %v405 = vadd.f32 %v332, %v384
    %v406 = vadd.f32 %v334, %v388
    %v407 = vadd.f32 %v375, %v392
    %v408 = vadd.f32 %v377, %v396
    %v409 = vmul.f32 %v401, 0.01
    %v410 = vmul.f32 %v402, 0.01
    %v411 = vmul.f32 %v403, 0.01
    %v412 = vmul.f32 %v404, 0.01
    %v413 = vmul.f32 %v405, 0.01
    %v414 = vmul.f32 %v406, 0.01
    %v415 = vmul.f32 %v407, 0.01
    %v416 = vmul.f32 %v408, 0.01
    %v417 = vmax.f32 %v401, %v409
    %v418 = vmax.f32 %v402, %v410
    %v419 = vmax.f32 %v403, %v411
    %v420 = vmax.f32 %v404, %v412
    %v421 = vmax.f32 %v405, %v413
    %v422 = vmax.f32 %v406, %v414
    %v423 = vmax.f32 %v407, %v415
    %v424 = vmax.f32 %v408, %v416
    %v425 = vpack.c.bf16 %v421, %v417
    %v426 = vpack.c.bf16 %v422, %v418
    %v427 = vpack.c.bf16 %v423, %v419
    %v428 = vpack.c.bf16 %v424, %v420
    %v429 = vld [vmem:[#allocation9] sm:$0xff]
    %v430 = vld [vmem:[#allocation9 + $0x8] sm:$0xff]
    %v431 = vld [vmem:[#allocation9 + $0x10] sm:$0xff]
    %v432 = vld [vmem:[#allocation9 + $0x18] sm:$0xff]
    %v433 = vld [vmem:[#allocation9 + $0x20] sm:$0xff]
    %v434 = vld [vmem:[#allocation9 + $0x28] sm:$0xff]
    %v435 = vld [vmem:[#allocation9 + $0x30] sm:$0xff]
    %v436 = vld [vmem:[#allocation9 + $0x38] sm:$0xff]
    %v437 = vld [vmem:[#allocation9 + $0x40] sm:$0xff]
    %v438 = vld [vmem:[#allocation9 + $0x48] sm:$0xff]
    %v439 = vld [vmem:[#allocation9 + $0x50] sm:$0xff]
    %v440 = vld [vmem:[#allocation9 + $0x58] sm:$0xff]
    %v441 = vld [vmem:[#allocation9 + $0x60] sm:$0xff]
    %v442 = vld [vmem:[#allocation9 + $0x68] sm:$0xff]
    %v443 = vld [vmem:[#allocation9 + $0x70] sm:$0xff]
    %v444 = vld [vmem:[#allocation9 + $0x78] sm:$0xff]
    %v445 = vld [vmem:[#allocation9 + $0x80] sm:$0xff]
    %v446 = vld [vmem:[#allocation9 + $0x88] sm:$0xff]
    %v447 = vld [vmem:[#allocation9 + $0x90] sm:$0xff]
    %v448 = vld [vmem:[#allocation9 + $0x98] sm:$0xff]
    %v449 = vld [vmem:[#allocation9 + $0xa0] sm:$0xff]
    %v450 = vld [vmem:[#allocation9 + $0xa8] sm:$0xff]
    %v451 = vld [vmem:[#allocation9 + $0xb0] sm:$0xff]
    %v452 = vld [vmem:[#allocation9 + $0xb8] sm:$0xff]
    %v453 = vld [vmem:[#allocation9 + $0xc0] sm:$0xff]
    %v454 = vld [vmem:[#allocation9 + $0xc8] sm:$0xff]
    %v455 = vld [vmem:[#allocation9 + $0xd0] sm:$0xff]
    %v456 = vld [vmem:[#allocation9 + $0xd8] sm:$0xff]
    %v457 = vld [vmem:[#allocation9 + $0xe0] sm:$0xff]
    %v458 = vld [vmem:[#allocation9 + $0xe8] sm:$0xff]
    %v459 = vld [vmem:[#allocation9 + $0xf0] sm:$0xff]
    %v460 = vld [vmem:[#allocation9 + $0xf8] sm:$0xff]
    %v461 = vld [vmem:[#allocation9 + $0x100] sm:$0xff]
    %v462 = vld [vmem:[#allocation9 + $0x108] sm:$0xff]
    %v463 = vld [vmem:[#allocation9 + $0x110] sm:$0xff]
    %v464 = vld [vmem:[#allocation9 + $0x118] sm:$0xff]
    %v465 = vld [vmem:[#allocation9 + $0x120] sm:$0xff]
    %v466 = vld [vmem:[#allocation9 + $0x128] sm:$0xff]
    %v467 = vld [vmem:[#allocation9 + $0x130] sm:$0xff]
    %v468 = vld [vmem:[#allocation9 + $0x138] sm:$0xff]
    %v469 = vld [vmem:[#allocation9 + $0x140] sm:$0xff]
    %v470 = vld [vmem:[#allocation9 + $0x148] sm:$0xff]
    %v471 = vld [vmem:[#allocation9 + $0x150] sm:$0xff]
    %v472 = vld [vmem:[#allocation9 + $0x158] sm:$0xff]
    %v473 = vld [vmem:[#allocation9 + $0x160] sm:$0xff]
    %v474 = vld [vmem:[#allocation9 + $0x168] sm:$0xff]
    %v475 = vld [vmem:[#allocation9 + $0x170] sm:$0xff]
    %v476 = vld [vmem:[#allocation9 + $0x178] sm:$0xff]
    %v477 = vld [vmem:[#allocation9 + $0x180] sm:$0xff]
    %v478 = vld [vmem:[#allocation9 + $0x188] sm:$0xff]
    %v479 = vld [vmem:[#allocation9 + $0x190] sm:$0xff]
    %v480 = vld [vmem:[#allocation9 + $0x198] sm:$0xff]
    %v481 = vld [vmem:[#allocation9 + $0x1a0] sm:$0xff]
    %v482 = vld [vmem:[#allocation9 + $0x1a8] sm:$0xff]
    %v483 = vld [vmem:[#allocation9 + $0x1b0] sm:$0xff]
    %v484 = vld [vmem:[#allocation9 + $0x1b8] sm:$0xff]
    %v485 = vld [vmem:[#allocation9 + $0x1c0] sm:$0xff]
    %v486 = vld [vmem:[#allocation9 + $0x1c8] sm:$0xff]
    %v487 = vld [vmem:[#allocation9 + $0x1d0] sm:$0xff]
    %v488 = vld [vmem:[#allocation9 + $0x1d8] sm:$0xff]
    %v489 = vld [vmem:[#allocation9 + $0x1e0] sm:$0xff]
    %v490 = vld [vmem:[#allocation9 + $0x1e8] sm:$0xff]
    %v491 = vld [vmem:[#allocation9 + $0x1f0] sm:$0xff]
    %v492 = vld [vmem:[#allocation9 + $0x1f8] sm:$0xff]
    %v493 = vld [vmem:[#allocation9 + $0x200] sm:$0xff]
    %v494 = vld [vmem:[#allocation9 + $0x208] sm:$0xff]
    %v495 = vld [vmem:[#allocation9 + $0x210] sm:$0xff]
    %v496 = vld [vmem:[#allocation9 + $0x218] sm:$0xff]
    %v497 = vld [vmem:[#allocation9 + $0x220] sm:$0xff]
    %v498 = vld [vmem:[#allocation9 + $0x228] sm:$0xff]
    %v499 = vld [vmem:[#allocation9 + $0x230] sm:$0xff]
    %v500 = vld [vmem:[#allocation9 + $0x238] sm:$0xff]
    %v501 = vld [vmem:[#allocation9 + $0x240] sm:$0xff]
    %v502 = vld [vmem:[#allocation9 + $0x248] sm:$0xff]
    %v503 = vld [vmem:[#allocation9 + $0x250] sm:$0xff]
    %v504 = vld [vmem:[#allocation9 + $0x258] sm:$0xff]
    %v505 = vld [vmem:[#allocation9 + $0x260] sm:$0xff]
    %v506 = vld [vmem:[#allocation9 + $0x268] sm:$0xff]
    %v507 = vld [vmem:[#allocation9 + $0x270] sm:$0xff]
    %v508 = vld [vmem:[#allocation9 + $0x278] sm:$0xff]
    %v509 = vld [vmem:[#allocation9 + $0x280] sm:$0xff]
    %v510 = vld [vmem:[#allocation9 + $0x288] sm:$0xff]
    %v511 = vld [vmem:[#allocation9 + $0x290] sm:$0xff]
    %v512 = vld [vmem:[#allocation9 + $0x298] sm:$0xff]
    %v513 = vld [vmem:[#allocation9 + $0x2a0] sm:$0xff]
    %v514 = vld [vmem:[#allocation9 + $0x2a8] sm:$0xff]
    %v515 = vld [vmem:[#allocation9 + $0x2b0] sm:$0xff]
    %v516 = vld [vmem:[#allocation9 + $0x2b8] sm:$0xff]
    %v517 = vld [vmem:[#allocation9 + $0x2c0] sm:$0xff]
    %v518 = vld [vmem:[#allocation9 + $0x2c8] sm:$0xff]
    %v519 = vld [vmem:[#allocation9 + $0x2d0] sm:$0xff]
    %v520 = vld [vmem:[#allocation9 + $0x2d8] sm:$0xff]
    %v521 = vld [vmem:[#allocation9 + $0x2e0] sm:$0xff]
    %v522 = vld [vmem:[#allocation9 + $0x2e8] sm:$0xff]
    %v523 = vld [vmem:[#allocation9 + $0x2f0] sm:$0xff]
    %v524 = vld [vmem:[#allocation9 + $0x2f8] sm:$0xff]
    %v525 = vld [vmem:[#allocation9 + $0x300] sm:$0xff]
    %v526 = vld [vmem:[#allocation9 + $0x308] sm:$0xff]
    %v527 = vld [vmem:[#allocation9 + $0x310] sm:$0xff]
    %v528 = vld [vmem:[#allocation9 + $0x318] sm:$0xff]
    %v529 = vld [vmem:[#allocation9 + $0x320] sm:$0xff]
    %v530 = vld [vmem:[#allocation9 + $0x328] sm:$0xff]
    %v531 = vld [vmem:[#allocation9 + $0x330] sm:$0xff]
    %v532 = vld [vmem:[#allocation9 + $0x338] sm:$0xff]
    %v533 = vld [vmem:[#allocation9 + $0x340] sm:$0xff]
    %v534 = vld [vmem:[#allocation9 + $0x348] sm:$0xff]
    %v535 = vld [vmem:[#allocation9 + $0x350] sm:$0xff]
    %v536 = vld [vmem:[#allocation9 + $0x358] sm:$0xff]
    %v537 = vld [vmem:[#allocation9 + $0x360] sm:$0xff]
    %v538 = vld [vmem:[#allocation9 + $0x368] sm:$0xff]
    %v539 = vld [vmem:[#allocation9 + $0x370] sm:$0xff]
    %v540 = vld [vmem:[#allocation9 + $0x378] sm:$0xff]
    %v541 = vld [vmem:[#allocation9 + $0x380] sm:$0xff]
    %v542 = vld [vmem:[#allocation9 + $0x388] sm:$0xff]
    %v543 = vld [vmem:[#allocation9 + $0x390] sm:$0xff]
    %v544 = vld [vmem:[#allocation9 + $0x398] sm:$0xff]
    %v545 = vld [vmem:[#allocation9 + $0x3a0] sm:$0xff]
    %v546 = vld [vmem:[#allocation9 + $0x3a8] sm:$0xff]
    %v547 = vld [vmem:[#allocation9 + $0x3b0] sm:$0xff]
    %v548 = vld [vmem:[#allocation9 + $0x3b8] sm:$0xff]
    %v549 = vld [vmem:[#allocation9 + $0x3c0] sm:$0xff]
    %v550 = vld [vmem:[#allocation9 + $0x3c8] sm:$0xff]
    %v551 = vld [vmem:[#allocation9 + $0x3d0] sm:$0xff]
    %v552 = vld [vmem:[#allocation9 + $0x3d8] sm:$0xff]
    %v553 = vld [vmem:[#allocation9 + $0x3e0] sm:$0xff]
    %v554 = vld [vmem:[#allocation9 + $0x3e8] sm:$0xff]
    %v555 = vld [vmem:[#allocation9 + $0x3f0] sm:$0xff]
    %v556 = vld [vmem:[#allocation9 + $0x3f8] sm:$0xff]
    %v557 = vld [vmem:[%s6] sm:$0xf]
    %v559 = vlaneseq
    %v560 = vshrl.u32 %v559, 7
    %v561 = vsub.s32 0, %v560
    %v562 = vrot.slane %v557, %v561
    %v563 = vlaneseq
    %v564 = vshrl.u32 %v563, 7
    %v565 = vsub.s32 1, %v564
    %v566 = vrot.slane %v557, %v565
    %v567 = vlaneseq
    %v568 = vshrl.u32 %v567, 7
    %v569 = vsub.s32 2, %v568
    %v570 = vrot.slane %v557, %v569
    %v571 = vlaneseq
    %v572 = vshrl.u32 %v571, 7
    %v573 = vsub.s32 3, %v572
    %v574 = vrot.slane %v557, %v573
    %v707 = vunpack.c.l.b16 %v429
    %v708 = vunpack.c.h.b16 %v429
    %v709 = vunpack.c.l.b16 %v430
    %v710 = vunpack.c.h.b16 %v430
    %v711 = vunpack.c.l.b16 %v431
    %v712 = vunpack.c.h.b16 %v431
    %v713 = vunpack.c.l.b16 %v432
    %v714 = vunpack.c.h.b16 %v432
    %v715 = vunpack.c.l.b16 %v433
    %v716 = vunpack.c.h.b16 %v433
    %v717 = vunpack.c.l.b16 %v434
    %v718 = vunpack.c.h.b16 %v434
    %v719 = vunpack.c.l.b16 %v435
    %v720 = vunpack.c.h.b16 %v435
    %v721 = vunpack.c.l.b16 %v436
    %v722 = vunpack.c.h.b16 %v436
    %v723 = vunpack.c.l.b16 %v437
    %v724 = vunpack.c.h.b16 %v437
    %v725 = vunpack.c.l.b16 %v438
    %v726 = vunpack.c.h.b16 %v438
    %v727 = vunpack.c.l.b16 %v439
    %v728 = vunpack.c.h.b16 %v439
    %v729 = vunpack.c.l.b16 %v440
    %v730 = vunpack.c.h.b16 %v440
    %v731 = vunpack.c.l.b16 %v441
    %v732 = vunpack.c.h.b16 %v441
    %v733 = vunpack.c.l.b16 %v442
    %v734 = vunpack.c.h.b16 %v442
    %v735 = vunpack.c.l.b16 %v443
    %v736 = vunpack.c.h.b16 %v443
    %v737 = vunpack.c.l.b16 %v444
    %v738 = vunpack.c.h.b16 %v444
    %v739 = vunpack.c.l.b16 %v445
    %v740 = vunpack.c.h.b16 %v445
    %v741 = vunpack.c.l.b16 %v446
    %v742 = vunpack.c.h.b16 %v446
    %v743 = vunpack.c.l.b16 %v447
    %v744 = vunpack.c.h.b16 %v447
    %v745 = vunpack.c.l.b16 %v448
    %v746 = vunpack.c.h.b16 %v448
    %v747 = vunpack.c.l.b16 %v449
    %v748 = vunpack.c.h.b16 %v449
    %v749 = vunpack.c.l.b16 %v450
    %v750 = vunpack.c.h.b16 %v450
    %v751 = vunpack.c.l.b16 %v451
    %v752 = vunpack.c.h.b16 %v451
    %v753 = vunpack.c.l.b16 %v452
    %v754 = vunpack.c.h.b16 %v452
    %v755 = vunpack.c.l.b16 %v453
    %v756 = vunpack.c.h.b16 %v453
    %v757 = vunpack.c.l.b16 %v454
    %v758 = vunpack.c.h.b16 %v454
    %v759 = vunpack.c.l.b16 %v455
    %v760 = vunpack.c.h.b16 %v455
    %v761 = vunpack.c.l.b16 %v456
    %v762 = vunpack.c.h.b16 %v456
    %v763 = vunpack.c.l.b16 %v457
    %v764 = vunpack.c.h.b16 %v457
    %v765 = vunpack.c.l.b16 %v458
    %v766 = vunpack.c.h.b16 %v458
    %v767 = vunpack.c.l.b16 %v459
    %v768 = vunpack.c.h.b16 %v459
    %v769 = vunpack.c.l.b16 %v460
    %v770 = vunpack.c.h.b16 %v460
    %v771 = vunpack.c.l.b16 %v461
    %v772 = vunpack.c.h.b16 %v461
    %v773 = vunpack.c.l.b16 %v462
    %v774 = vunpack.c.h.b16 %v462
    %v775 = vunpack.c.l.b16 %v463
    %v776 = vunpack.c.h.b16 %v463
    %v777 = vunpack.c.l.b16 %v464
    %v778 = vunpack.c.h.b16 %v464
    %v779 = vunpack.c.l.b16 %v465
    %v780 = vunpack.c.h.b16 %v465
    %v781 = vunpack.c.l.b16 %v466
    %v782 = vunpack.c.h.b16 %v466
    %v783 = vunpack.c.l.b16 %v467
    %v784 = vunpack.c.h.b16 %v467
    %v785 = vunpack.c.l.b16 %v468
    %v786 = vunpack.c.h.b16 %v468
    %v787 = vunpack.c.l.b16 %v469
    %v788 = vunpack.c.h.b16 %v469
    %v789 = vunpack.c.l.b16 %v470
    %v790 = vunpack.c.h.b16 %v470
    %v791 = vunpack.c.l.b16 %v471
    %v792 = vunpack.c.h.b16 %v471
    %v793 = vunpack.c.l.b16 %v472
    %v794 = vunpack.c.h.b16 %v472
    %v795 = vunpack.c.l.b16 %v473
    %v796 = vunpack.c.h.b16 %v473
    %v797 = vunpack.c.l.b16 %v474
    %v798 = vunpack.c.h.b16 %v474
    %v799 = vunpack.c.l.b16 %v475
    %v800 = vunpack.c.h.b16 %v475
    %v801 = vunpack.c.l.b16 %v476
    %v802 = vunpack.c.h.b16 %v476
    %v803 = vunpack.c.l.b16 %v477
    %v804 = vunpack.c.h.b16 %v477
    %v805 = vunpack.c.l.b16 %v478
    %v806 = vunpack.c.h.b16 %v478
    %v807 = vunpack.c.l.b16 %v479
    %v808 = vunpack.c.h.b16 %v479
    %v809 = vunpack.c.l.b16 %v480
    %v810 = vunpack.c.h.b16 %v480
    %v811 = vunpack.c.l.b16 %v481
    %v812 = vunpack.c.h.b16 %v481
    %v813 = vunpack.c.l.b16 %v482
    %v814 = vunpack.c.h.b16 %v482
    %v815 = vunpack.c.l.b16 %v483
    %v816 = vunpack.c.h.b16 %v483
    %v817 = vunpack.c.l.b16 %v484
    %v818 = vunpack.c.h.b16 %v484
    %v819 = vunpack.c.l.b16 %v485
    %v820 = vunpack.c.h.b16 %v485
    %v821 = vunpack.c.l.b16 %v486
    %v822 = vunpack.c.h.b16 %v486
    %v823 = vunpack.c.l.b16 %v487
    %v824 = vunpack.c.h.b16 %v487
    %v825 = vunpack.c.l.b16 %v488
    %v826 = vunpack.c.h.b16 %v488
    %v827 = vunpack.c.l.b16 %v489
    %v828 = vunpack.c.h.b16 %v489
    %v829 = vunpack.c.l.b16 %v490
    %v830 = vunpack.c.h.b16 %v490
    %v831 = vunpack.c.l.b16 %v491
    %v832 = vunpack.c.h.b16 %v491
    %v833 = vunpack.c.l.b16 %v492
    %v834 = vunpack.c.h.b16 %v492
    %v835 = vunpack.c.l.b16 %v493
    %v836 = vunpack.c.h.b16 %v493
    %v837 = vunpack.c.l.b16 %v494
    %v838 = vunpack.c.h.b16 %v494
    %v839 = vunpack.c.l.b16 %v495
    %v840 = vunpack.c.h.b16 %v495
    %v841 = vunpack.c.l.b16 %v496
    %v842 = vunpack.c.h.b16 %v496
    %v843 = vunpack.c.l.b16 %v497
    %v844 = vunpack.c.h.b16 %v497
    %v845 = vunpack.c.l.b16 %v498
    %v846 = vunpack.c.h.b16 %v498
    %v847 = vunpack.c.l.b16 %v499
    %v848 = vunpack.c.h.b16 %v499
    %v849 = vunpack.c.l.b16 %v500
    %v850 = vunpack.c.h.b16 %v500
    %v851 = vunpack.c.l.b16 %v501
    %v852 = vunpack.c.h.b16 %v501
    %v853 = vunpack.c.l.b16 %v502
    %v854 = vunpack.c.h.b16 %v502
    %v855 = vunpack.c.l.b16 %v503
    %v856 = vunpack.c.h.b16 %v503
    %v857 = vunpack.c.l.b16 %v504
    %v858 = vunpack.c.h.b16 %v504
    %v859 = vunpack.c.l.b16 %v505
    %v860 = vunpack.c.h.b16 %v505
    %v861 = vunpack.c.l.b16 %v506
    %v862 = vunpack.c.h.b16 %v506
    %v863 = vunpack.c.l.b16 %v507
    %v864 = vunpack.c.h.b16 %v507
    %v865 = vunpack.c.l.b16 %v508
    %v866 = vunpack.c.h.b16 %v508
    %v867 = vunpack.c.l.b16 %v509
    %v868 = vunpack.c.h.b16 %v509
    %v869 = vunpack.c.l.b16 %v510
    %v870 = vunpack.c.h.b16 %v510
    %v871 = vunpack.c.l.b16 %v511
    %v872 = vunpack.c.h.b16 %v511
    %v873 = vunpack.c.l.b16 %v512
    %v874 = vunpack.c.h.b16 %v512
    %v875 = vunpack.c.l.b16 %v513
    %v876 = vunpack.c.h.b16 %v513
    %v877 = vunpack.c.l.b16 %v514
    %v878 = vunpack.c.h.b16 %v514
    %v879 = vunpack.c.l.b16 %v515
    %v880 = vunpack.c.h.b16 %v515
    %v881 = vunpack.c.l.b16 %v516
    %v882 = vunpack.c.h.b16 %v516
    %v883 = vunpack.c.l.b16 %v517
    %v884 = vunpack.c.h.b16 %v517
    %v885 = vunpack.c.l.b16 %v518
    %v886 = vunpack.c.h.b16 %v518
    %v887 = vunpack.c.l.b16 %v519
    %v888 = vunpack.c.h.b16 %v519
    %v889 = vunpack.c.l.b16 %v520
    %v890 = vunpack.c.h.b16 %v520
    %v891 = vunpack.c.l.b16 %v521
    %v892 = vunpack.c.h.b16 %v521
    %v893 = vunpack.c.l.b16 %v522
    %v894 = vunpack.c.h.b16 %v522
    %v895 = vunpack.c.l.b16 %v523
    %v896 = vunpack.c.h.b16 %v523
    %v897 = vunpack.c.l.b16 %v524
    %v898 = vunpack.c.h.b16 %v524
    %v899 = vunpack.c.l.b16 %v525
    %v900 = vunpack.c.h.b16 %v525
    %v901 = vunpack.c.l.b16 %v526
    %v902 = vunpack.c.h.b16 %v526
    %v903 = vunpack.c.l.b16 %v527
    %v904 = vunpack.c.h.b16 %v527
    %v905 = vunpack.c.l.b16 %v528
    %v906 = vunpack.c.h.b16 %v528
    %v907 = vunpack.c.l.b16 %v529
    %v908 = vunpack.c.h.b16 %v529
    %v909 = vunpack.c.l.b16 %v530
    %v910 = vunpack.c.h.b16 %v530
    %v911 = vunpack.c.l.b16 %v531
    %v912 = vunpack.c.h.b16 %v531
    %v913 = vunpack.c.l.b16 %v532
    %v914 = vunpack.c.h.b16 %v532
    %v915 = vunpack.c.l.b16 %v533
    %v916 = vunpack.c.h.b16 %v533
    %v917 = vunpack.c.l.b16 %v534
    %v918 = vunpack.c.h.b16 %v534
    %v919 = vunpack.c.l.b16 %v535
    %v920 = vunpack.c.h.b16 %v535
    %v921 = vunpack.c.l.b16 %v536
    %v922 = vunpack.c.h.b16 %v536
    %v923 = vunpack.c.l.b16 %v537
    %v924 = vunpack.c.h.b16 %v537
    %v925 = vunpack.c.l.b16 %v538
    %v926 = vunpack.c.h.b16 %v538
    %v927 = vunpack.c.l.b16 %v539
    %v928 = vunpack.c.h.b16 %v539
    %v929 = vunpack.c.l.b16 %v540
    %v930 = vunpack.c.h.b16 %v540
    %v931 = vunpack.c.l.b16 %v541
    %v932 = vunpack.c.h.b16 %v541
    %v933 = vunpack.c.l.b16 %v542
    %v934 = vunpack.c.h.b16 %v542
    %v935 = vunpack.c.l.b16 %v543
    %v936 = vunpack.c.h.b16 %v543
    %v937 = vunpack.c.l.b16 %v544
    %v938 = vunpack.c.h.b16 %v544
    %v939 = vunpack.c.l.b16 %v545
    %v940 = vunpack.c.h.b16 %v545
    %v941 = vunpack.c.l.b16 %v546
    %v942 = vunpack.c.h.b16 %v546
    %v943 = vunpack.c.l.b16 %v547
    %v944 = vunpack.c.h.b16 %v547
    %v945 = vunpack.c.l.b16 %v548
    %v946 = vunpack.c.h.b16 %v548
    %v947 = vunpack.c.l.b16 %v549
    %v948 = vunpack.c.h.b16 %v549
    %v949 = vunpack.c.l.b16 %v550
    %v950 = vunpack.c.h.b16 %v550
    %v951 = vunpack.c.l.b16 %v551
    %v952 = vunpack.c.h.b16 %v551
    %v953 = vunpack.c.l.b16 %v552
    %v954 = vunpack.c.h.b16 %v552
    %v955 = vunpack.c.l.b16 %v553
    %v956 = vunpack.c.h.b16 %v553
    %v957 = vunpack.c.l.b16 %v554
    %v958 = vunpack.c.h.b16 %v554
    %v959 = vunpack.c.l.b16 %v555
    %v960 = vunpack.c.h.b16 %v555
    %v961 = vunpack.c.l.b16 %v556
    %v962 = vunpack.c.h.b16 %v556
    %v963 = vpack.c.b16 %v711, %v707
    %v964 = vpack.c.b16 %v712, %v708
    %v965 = vpack.c.b16 %v713, %v709
    %v966 = vpack.c.b16 %v714, %v710
    %v967 = vpack.c.b16 %v719, %v715
    %v968 = vpack.c.b16 %v720, %v716
    %v969 = vpack.c.b16 %v721, %v717
    %v970 = vpack.c.b16 %v722, %v718
    %v971 = vpack.c.b16 %v727, %v723
    %v972 = vpack.c.b16 %v728, %v724
    %v973 = vpack.c.b16 %v729, %v725
    %v974 = vpack.c.b16 %v730, %v726
    %v975 = vpack.c.b16 %v735, %v731
    %v976 = vpack.c.b16 %v736, %v732
    %v977 = vpack.c.b16 %v737, %v733
    %v978 = vpack.c.b16 %v738, %v734
    %v979 = vpack.c.b16 %v743, %v739
    %v980 = vpack.c.b16 %v744, %v740
    %v981 = vpack.c.b16 %v745, %v741
    %v982 = vpack.c.b16 %v746, %v742
    %v983 = vpack.c.b16 %v751, %v747
    %v984 = vpack.c.b16 %v752, %v748
    %v985 = vpack.c.b16 %v753, %v749
    %v986 = vpack.c.b16 %v754, %v750
    %v987 = vpack.c.b16 %v759, %v755
    %v988 = vpack.c.b16 %v760, %v756
    %v989 = vpack.c.b16 %v761, %v757
    %v990 = vpack.c.b16 %v762, %v758
    %v991 = vpack.c.b16 %v767, %v763
    %v992 = vpack.c.b16 %v768, %v764
    %v993 = vpack.c.b16 %v769, %v765
    %v994 = vpack.c.b16 %v770, %v766
    %v995 = vpack.c.b16 %v775, %v771
    %v996 = vpack.c.b16 %v776, %v772
    %v997 = vpack.c.b16 %v777, %v773
    %v998 = vpack.c.b16 %v778, %v774
    %v999 = vpack.c.b16 %v783, %v779
    %v1000 = vpack.c.b16 %v784, %v780
    %v1001 = vpack.c.b16 %v785, %v781
    %v1002 = vpack.c.b16 %v786, %v782
    %v1003 = vpack.c.b16 %v791, %v787
    %v1004 = vpack.c.b16 %v792, %v788
    %v1005 = vpack.c.b16 %v793, %v789
    %v1006 = vpack.c.b16 %v794, %v790
    %v1007 = vpack.c.b16 %v799, %v795
    %v1008 = vpack.c.b16 %v800, %v796
    %v1009 = vpack.c.b16 %v801, %v797
    %v1010 = vpack.c.b16 %v802, %v798
    %v1011 = vpack.c.b16 %v807, %v803
    %v1012 = vpack.c.b16 %v808, %v804
    %v1013 = vpack.c.b16 %v809, %v805
    %v1014 = vpack.c.b16 %v810, %v806
    %v1015 = vpack.c.b16 %v815, %v811
    %v1016 = vpack.c.b16 %v816, %v812
    %v1017 = vpack.c.b16 %v817, %v813
    %v1018 = vpack.c.b16 %v818, %v814
    %v1019 = vpack.c.b16 %v823, %v819
    %v1020 = vpack.c.b16 %v824, %v820
    %v1021 = vpack.c.b16 %v825, %v821
    %v1022 = vpack.c.b16 %v826, %v822
    %v1023 = vpack.c.b16 %v831, %v827
    %v1024 = vpack.c.b16 %v832, %v828
    %v1025 = vpack.c.b16 %v833, %v829
    %v1026 = vpack.c.b16 %v834, %v830
    %v1027 = vpack.c.b16 %v839, %v835
    %v1028 = vpack.c.b16 %v840, %v836
    %v1029 = vpack.c.b16 %v841, %v837
    %v1030 = vpack.c.b16 %v842, %v838
    %v1031 = vpack.c.b16 %v847, %v843
    %v1032 = vpack.c.b16 %v848, %v844
    %v1033 = vpack.c.b16 %v849, %v845
    %v1034 = vpack.c.b16 %v850, %v846
    %v1035 = vpack.c.b16 %v855, %v851
    %v1036 = vpack.c.b16 %v856, %v852
    %v1037 = vpack.c.b16 %v857, %v853
    %v1038 = vpack.c.b16 %v858, %v854
    %v1039 = vpack.c.b16 %v863, %v859
    %v1040 = vpack.c.b16 %v864, %v860
    %v1041 = vpack.c.b16 %v865, %v861
    %v1042 = vpack.c.b16 %v866, %v862
    %v1043 = vpack.c.b16 %v871, %v867
    %v1044 = vpack.c.b16 %v872, %v868
    %v1045 = vpack.c.b16 %v873, %v869
    %v1046 = vpack.c.b16 %v874, %v870
    %v1047 = vpack.c.b16 %v879, %v875
    %v1048 = vpack.c.b16 %v880, %v876
    %v1049 = vpack.c.b16 %v881, %v877
    %v1050 = vpack.c.b16 %v882, %v878
    %v1051 = vpack.c.b16 %v887, %v883
    %v1052 = vpack.c.b16 %v888, %v884
    %v1053 = vpack.c.b16 %v889, %v885
    %v1054 = vpack.c.b16 %v890, %v886
    %v1055 = vpack.c.b16 %v895, %v891
    %v1056 = vpack.c.b16 %v896, %v892
    %v1057 = vpack.c.b16 %v897, %v893
    %v1058 = vpack.c.b16 %v898, %v894
    %v1059 = vpack.c.b16 %v903, %v899
    %v1060 = vpack.c.b16 %v904, %v900
    %v1061 = vpack.c.b16 %v905, %v901
    %v1062 = vpack.c.b16 %v906, %v902
    %v1063 = vpack.c.b16 %v911, %v907
    %v1064 = vpack.c.b16 %v912, %v908
    %v1065 = vpack.c.b16 %v913, %v909
    %v1066 = vpack.c.b16 %v914, %v910
    %v1067 = vpack.c.b16 %v919, %v915
    %v1068 = vpack.c.b16 %v920, %v916
    %v1069 = vpack.c.b16 %v921, %v917
    %v1070 = vpack.c.b16 %v922, %v918
    %v1071 = vpack.c.b16 %v927, %v923
    %v1072 = vpack.c.b16 %v928, %v924
    %v1073 = vpack.c.b16 %v929, %v925
    %v1074 = vpack.c.b16 %v930, %v926
    %v1075 = vpack.c.b16 %v935, %v931
    %v1076 = vpack.c.b16 %v936, %v932
    %v1077 = vpack.c.b16 %v937, %v933
    %v1078 = vpack.c.b16 %v938, %v934
    %v1079 = vpack.c.b16 %v943, %v939
    %v1080 = vpack.c.b16 %v944, %v940
    %v1081 = vpack.c.b16 %v945, %v941
    %v1082 = vpack.c.b16 %v946, %v942
    %v1083 = vpack.c.b16 %v951, %v947
    %v1084 = vpack.c.b16 %v952, %v948
    %v1085 = vpack.c.b16 %v953, %v949
    %v1086 = vpack.c.b16 %v954, %v950
    %v1087 = vpack.c.b16 %v959, %v955
    %v1088 = vpack.c.b16 %v960, %v956
    %v1089 = vpack.c.b16 %v961, %v957
    %v1090 = vpack.c.b16 %v962, %v958
    %1219 = vmatprep.subr.bf16.mxu0 %v964
    %1220 = vmatpush1.bf16.msra.mxu0 %v963
    %1221 = vmatprep.subr.bf16.mxu0 %v968
    %1222 = vmatpush1.bf16.msra.mxu0 %v967
    %1223 = vmatprep.subr.bf16.mxu0 %v972
    %1224 = vmatpush1.bf16.msra.mxu0 %v971
    %1225 = vmatprep.subr.bf16.mxu0 %v976
    %1226 = vmatpush1.bf16.msra.mxu0 %v975
    %1227 = vmatprep.subr.bf16.mxu0 %v980
    %1228 = vmatpush1.bf16.msra.mxu0 %v979
    %1229 = vmatprep.subr.bf16.mxu0 %v984
    %1230 = vmatpush1.bf16.msra.mxu0 %v983
    %1231 = vmatprep.subr.bf16.mxu0 %v988
    %1232 = vmatpush1.bf16.msra.mxu0 %v987
    %1233 = vmatprep.subr.bf16.mxu0 %v992
    %1234 = vmatpush1.bf16.msra.mxu0 %v991
    %1235 = vmatprep.subr.bf16.mxu0 %v996
    %1236 = vmatpush1.bf16.msra.mxu0 %v995
    %1237 = vmatprep.subr.bf16.mxu0 %v1000
    %1238 = vmatpush1.bf16.msra.mxu0 %v999
    %1239 = vmatprep.subr.bf16.mxu0 %v1004
    %1240 = vmatpush1.bf16.msra.mxu0 %v1003
    %1241 = vmatprep.subr.bf16.mxu0 %v1008
    %1242 = vmatpush1.bf16.msra.mxu0 %v1007
    %1243 = vmatprep.subr.bf16.mxu0 %v1012
    %1244 = vmatpush1.bf16.msra.mxu0 %v1011
    %1245 = vmatprep.subr.bf16.mxu0 %v1016
    %1246 = vmatpush1.bf16.msra.mxu0 %v1015
    %1247 = vmatprep.subr.bf16.mxu0 %v1020
    %1248 = vmatpush1.bf16.msra.mxu0 %v1019
    %1249 = vmatprep.subr.bf16.mxu0 %v1024
    %1250 = vmatpush1.bf16.msra.mxu0 %v1023
    %1251 = vmatprep.mubr.bf16.mxu0 %v426
    %1252 = vmatmul.mubr.bf16.gmra.mrb[0].mxu0 %v425
    %v1253 = vpop.f32.mrb[0].mxu0
    %v1254 = vadd.f32 %v562, %v1253
    %v1255 = vpop.f32.mrb[0].mxu0
    %v1256 = vadd.f32 %v566, %v1255
    %v1257 = vpop.f32.mrb[0].mxu0
    %v1258 = vadd.f32 %v562, %v1257
    %v1259 = vpop.f32.mrb[0].mxu0
    %v1260 = vadd.f32 %v566, %v1259
    %1261 = vdwg.mxu0
    %1262 = vmatprep.subr.bf16.mxu0 %v1028
    %1263 = vmatpush1.bf16.msra.mxu0 %v1027
    %1264 = vmatprep.subr.bf16.mxu0 %v1032
    %1265 = vmatpush1.bf16.msra.mxu0 %v1031
    %1266 = vmatprep.subr.bf16.mxu0 %v1036
    %1267 = vmatpush1.bf16.msra.mxu0 %v1035
    %1268 = vmatprep.subr.bf16.mxu0 %v1040
    %1269 = vmatpush1.bf16.msra.mxu0 %v1039
    %1270 = vmatprep.subr.bf16.mxu0 %v1044
    %1271 = vmatpush1.bf16.msra.mxu0 %v1043
    %1272 = vmatprep.subr.bf16.mxu0 %v1048
    %1273 = vmatpush1.bf16.msra.mxu0 %v1047
    %1274 = vmatprep.subr.bf16.mxu0 %v1052
    %1275 = vmatpush1.bf16.msra.mxu0 %v1051
    %1276 = vmatprep.subr.bf16.mxu0 %v1056
    %1277 = vmatpush1.bf16.msra.mxu0 %v1055
    %1278 = vmatprep.subr.bf16.mxu0 %v1060
    %1279 = vmatpush1.bf16.msra.mxu0 %v1059
    %1280 = vmatprep.subr.bf16.mxu0 %v1064
    %1281 = vmatpush1.bf16.msra.mxu0 %v1063
    %1282 = vmatprep.subr.bf16.mxu0 %v1068
    %1283 = vmatpush1.bf16.msra.mxu0 %v1067
    %1284 = vmatprep.subr.bf16.mxu0 %v1072
    %1285 = vmatpush1.bf16.msra.mxu0 %v1071
    %1286 = vmatprep.subr.bf16.mxu0 %v1076
    %1287 = vmatpush1.bf16.msra.mxu0 %v1075
    %1288 = vmatprep.subr.bf16.mxu0 %v1080
    %1289 = vmatpush1.bf16.msra.mxu0 %v1079
    %1290 = vmatprep.subr.bf16.mxu0 %v1084
    %1291 = vmatpush1.bf16.msra.mxu0 %v1083
    %1292 = vmatprep.subr.bf16.mxu0 %v1088
    %1293 = vmatpush1.bf16.msra.mxu0 %v1087
    %1294 = vmatprep.mubr.bf16.mxu0 %v428
    %1295 = vmatmul.mubr.bf16.gmra.mrb[0].mxu0 %v427
    %v1296 = vpop.f32.mrb[0].mxu0
    %v1297 = vadd.f32 %v1254, %v1296
    %v1298 = vpop.f32.mrb[0].mxu0
    %v1299 = vadd.f32 %v1256, %v1298
    %v1300 = vpop.f32.mrb[0].mxu0
    %v1301 = vadd.f32 %v1258, %v1300
    %v1302 = vpop.f32.mrb[0].mxu0
    %v1303 = vadd.f32 %v1260, %v1302
    %1304 = vdwg.mxu0
    %1305 = vmatprep.subr.bf16.mxu0 %v966
    %1306 = vmatpush1.bf16.msra.mxu0 %v965
    %1307 = vmatprep.subr.bf16.mxu0 %v970
    %1308 = vmatpush1.bf16.msra.mxu0 %v969
    %1309 = vmatprep.subr.bf16.mxu0 %v974
    %1310 = vmatpush1.bf16.msra.mxu0 %v973
    %1311 = vmatprep.subr.bf16.mxu0 %v978
    %1312 = vmatpush1.bf16.msra.mxu0 %v977
    %1313 = vmatprep.subr.bf16.mxu0 %v982
    %1314 = vmatpush1.bf16.msra.mxu0 %v981
    %1315 = vmatprep.subr.bf16.mxu0 %v986
    %1316 = vmatpush1.bf16.msra.mxu0 %v985
    %1317 = vmatprep.subr.bf16.mxu0 %v990
    %1318 = vmatpush1.bf16.msra.mxu0 %v989
    %1319 = vmatprep.subr.bf16.mxu0 %v994
    %1320 = vmatpush1.bf16.msra.mxu0 %v993
    %1321 = vmatprep.subr.bf16.mxu0 %v998
    %1322 = vmatpush1.bf16.msra.mxu0 %v997
    %1323 = vmatprep.subr.bf16.mxu0 %v1002
    %1324 = vmatpush1.bf16.msra.mxu0 %v1001
    %1325 = vmatprep.subr.bf16.mxu0 %v1006
    %1326 = vmatpush1.bf16.msra.mxu0 %v1005
    %1327 = vmatprep.subr.bf16.mxu0 %v1010
    %1328 = vmatpush1.bf16.msra.mxu0 %v1009
    %1329 = vmatprep.subr.bf16.mxu0 %v1014
    %1330 = vmatpush1.bf16.msra.mxu0 %v1013
    %1331 = vmatprep.subr.bf16.mxu0 %v1018
    %1332 = vmatpush1.bf16.msra.mxu0 %v1017
    %1333 = vmatprep.subr.bf16.mxu0 %v1022
    %1334 = vmatpush1.bf16.msra.mxu0 %v1021
    %1335 = vmatprep.subr.bf16.mxu0 %v1026
    %1336 = vmatpush1.bf16.msra.mxu0 %v1025
    %1337 = vmatprep.mubr.bf16.mxu0 %v426
    %1338 = vmatmul.mubr.bf16.gmra.mrb[0].mxu0 %v425
    %v1339 = vpop.f32.mrb[0].mxu0
    %v1340 = vadd.f32 %v570, %v1339
    %v1341 = vpop.f32.mrb[0].mxu0
    %v1342 = vadd.f32 %v574, %v1341
    %v1343 = vpop.f32.mrb[0].mxu0
    %v1344 = vadd.f32 %v570, %v1343
    %v1345 = vpop.f32.mrb[0].mxu0
    %v1346 = vadd.f32 %v574, %v1345
    %1347 = vdwg.mxu0
    %1348 = vmatprep.subr.bf16.mxu0 %v1030
    %1349 = vmatpush1.bf16.msra.mxu0 %v1029
    %1350 = vmatprep.subr.bf16.mxu0 %v1034
    %1351 = vmatpush1.bf16.msra.mxu0 %v1033
    %1352 = vmatprep.subr.bf16.mxu0 %v1038
    %1353 = vmatpush1.bf16.msra.mxu0 %v1037
    %1354 = vmatprep.subr.bf16.mxu0 %v1042
    %1355 = vmatpush1.bf16.msra.mxu0 %v1041
    %1356 = vmatprep.subr.bf16.mxu0 %v1046
    %1357 = vmatpush1.bf16.msra.mxu0 %v1045
    %1358 = vmatprep.subr.bf16.mxu0 %v1050
    %1359 = vmatpush1.bf16.msra.mxu0 %v1049
    %1360 = vmatprep.subr.bf16.mxu0 %v1054
    %1361 = vmatpush1.bf16.msra.mxu0 %v1053
    %1362 = vmatprep.subr.bf16.mxu0 %v1058
    %1363 = vmatpush1.bf16.msra.mxu0 %v1057
    %1364 = vmatprep.subr.bf16.mxu0 %v1062
    %1365 = vmatpush1.bf16.msra.mxu0 %v1061
    %1366 = vmatprep.subr.bf16.mxu0 %v1066
    %1367 = vmatpush1.bf16.msra.mxu0 %v1065
    %1368 = vmatprep.subr.bf16.mxu0 %v1070
    %1369 = vmatpush1.bf16.msra.mxu0 %v1069
    %1370 = vmatprep.subr.bf16.mxu0 %v1074
    %1371 = vmatpush1.bf16.msra.mxu0 %v1073
    %1372 = vmatprep.subr.bf16.mxu0 %v1078
    %1373 = vmatpush1.bf16.msra.mxu0 %v1077
    %1374 = vmatprep.subr.bf16.mxu0 %v1082
    %1375 = vmatpush1.bf16.msra.mxu0 %v1081
    %1376 = vmatprep.subr.bf16.mxu0 %v1086
    %1377 = vmatpush1.bf16.msra.mxu0 %v1085
    %1378 = vmatprep.subr.bf16.mxu0 %v1090
    %1379 = vmatpush1.bf16.msra.mxu0 %v1089
    %1380 = vmatprep.mubr.bf16.mxu0 %v428
    %1381 = vmatmul.mubr.bf16.gmra.mrb[0].mxu0 %v427
    %v1382 = vpop.f32.mrb[0].mxu0
    %v1383 = vadd.f32 %v1340, %v1382
    %v1384 = vpop.f32.mrb[0].mxu0
    %v1385 = vadd.f32 %v1342, %v1384
    %v1386 = vpop.f32.mrb[0].mxu0
    %v1387 = vadd.f32 %v1344, %v1386
    %v1388 = vpop.f32.mrb[0].mxu0
    %v1389 = vadd.f32 %v1346, %v1388
    %1390 = vdwg.mxu0
    %v1391 = vmul.f32 %v1297, 0.01
    %v1392 = vmul.f32 %v1299, 0.01
    %v1393 = vmul.f32 %v1383, 0.01
    %v1394 = vmul.f32 %v1385, 0.01
    %v1395 = vmul.f32 %v1301, 0.01
    %v1396 = vmul.f32 %v1303, 0.01
    %v1397 = vmul.f32 %v1387, 0.01
    %v1398 = vmul.f32 %v1389, 0.01
    %v1399 = vmax.f32 %v1297, %v1391
    %v1400 = vmax.f32 %v1299, %v1392
    %v1401 = vmax.f32 %v1383, %v1393
    %v1402 = vmax.f32 %v1385, %v1394
    %v1403 = vmax.f32 %v1301, %v1395
    %v1404 = vmax.f32 %v1303, %v1396
    %v1405 = vmax.f32 %v1387, %v1397
    %v1406 = vmax.f32 %v1389, %v1398
    %v1407 = vpack.c.bf16 %v1403, %v1399
    %v1408 = vpack.c.bf16 %v1404, %v1400
    %v1409 = vpack.c.bf16 %v1405, %v1401
    %v1410 = vpack.c.bf16 %v1406, %v1402
    %v1411 = vld [vmem:[#allocation11] sm:$0xff]
    %v1412 = vld [vmem:[#allocation11 + $0x8] sm:$0xff]
    %v1413 = vld [vmem:[#allocation11 + $0x10] sm:$0xff]
    %v1414 = vld [vmem:[#allocation11 + $0x18] sm:$0xff]
    %v1415 = vld [vmem:[#allocation11 + $0x20] sm:$0xff]
    %v1416 = vld [vmem:[#allocation11 + $0x28] sm:$0xff]
    %v1417 = vld [vmem:[#allocation11 + $0x30] sm:$0xff]
    %v1418 = vld [vmem:[#allocation11 + $0x38] sm:$0xff]
    %v1419 = vld [vmem:[#allocation11 + $0x40] sm:$0xff]
    %v1420 = vld [vmem:[#allocation11 + $0x48] sm:$0xff]
    %v1421 = vld [vmem:[#allocation11 + $0x50] sm:$0xff]
    %v1422 = vld [vmem:[#allocation11 + $0x58] sm:$0xff]
    %v1423 = vld [vmem:[#allocation11 + $0x60] sm:$0xff]
    %v1424 = vld [vmem:[#allocation11 + $0x68] sm:$0xff]
    %v1425 = vld [vmem:[#allocation11 + $0x70] sm:$0xff]
    %v1426 = vld [vmem:[#allocation11 + $0x78] sm:$0xff]
    %v1427 = vld [vmem:[#allocation11 + $0x80] sm:$0xff]
    %v1428 = vld [vmem:[#allocation11 + $0x88] sm:$0xff]
    %v1429 = vld [vmem:[#allocation11 + $0x90] sm:$0xff]
    %v1430 = vld [vmem:[#allocation11 + $0x98] sm:$0xff]
    %v1431 = vld [vmem:[#allocation11 + $0xa0] sm:$0xff]
    %v1432 = vld [vmem:[#allocation11 + $0xa8] sm:$0xff]
    %v1433 = vld [vmem:[#allocation11 + $0xb0] sm:$0xff]
    %v1434 = vld [vmem:[#allocation11 + $0xb8] sm:$0xff]
    %v1435 = vld [vmem:[#allocation11 + $0xc0] sm:$0xff]
    %v1436 = vld [vmem:[#allocation11 + $0xc8] sm:$0xff]
    %v1437 = vld [vmem:[#allocation11 + $0xd0] sm:$0xff]
    %v1438 = vld [vmem:[#allocation11 + $0xd8] sm:$0xff]
    %v1439 = vld [vmem:[#allocation11 + $0xe0] sm:$0xff]
    %v1440 = vld [vmem:[#allocation11 + $0xe8] sm:$0xff]
    %v1441 = vld [vmem:[#allocation11 + $0xf0] sm:$0xff]
    %v1442 = vld [vmem:[#allocation11 + $0xf8] sm:$0xff]
    %v1443 = vld [vmem:[#allocation11 + $0x100] sm:$0xff]
    %v1444 = vld [vmem:[#allocation11 + $0x108] sm:$0xff]
    %v1445 = vld [vmem:[#allocation11 + $0x110] sm:$0xff]
    %v1446 = vld [vmem:[#allocation11 + $0x118] sm:$0xff]
    %v1447 = vld [vmem:[#allocation11 + $0x120] sm:$0xff]
    %v1448 = vld [vmem:[#allocation11 + $0x128] sm:$0xff]
    %v1449 = vld [vmem:[#allocation11 + $0x130] sm:$0xff]
    %v1450 = vld [vmem:[#allocation11 + $0x138] sm:$0xff]
    %v1451 = vld [vmem:[#allocation11 + $0x140] sm:$0xff]
    %v1452 = vld [vmem:[#allocation11 + $0x148] sm:$0xff]
    %v1453 = vld [vmem:[#allocation11 + $0x150] sm:$0xff]
    %v1454 = vld [vmem:[#allocation11 + $0x158] sm:$0xff]
    %v1455 = vld [vmem:[#allocation11 + $0x160] sm:$0xff]
    %v1456 = vld [vmem:[#allocation11 + $0x168] sm:$0xff]
    %v1457 = vld [vmem:[#allocation11 + $0x170] sm:$0xff]
    %v1458 = vld [vmem:[#allocation11 + $0x178] sm:$0xff]
    %v1459 = vld [vmem:[#allocation11 + $0x180] sm:$0xff]
    %v1460 = vld [vmem:[#allocation11 + $0x188] sm:$0xff]
    %v1461 = vld [vmem:[#allocation11 + $0x190] sm:$0xff]
    %v1462 = vld [vmem:[#allocation11 + $0x198] sm:$0xff]
    %v1463 = vld [vmem:[#allocation11 + $0x1a0] sm:$0xff]
    %v1464 = vld [vmem:[#allocation11 + $0x1a8] sm:$0xff]
    %v1465 = vld [vmem:[#allocation11 + $0x1b0] sm:$0xff]
    %v1466 = vld [vmem:[#allocation11 + $0x1b8] sm:$0xff]
    %v1467 = vld [vmem:[#allocation11 + $0x1c0] sm:$0xff]
    %v1468 = vld [vmem:[#allocation11 + $0x1c8] sm:$0xff]
    %v1469 = vld [vmem:[#allocation11 + $0x1d0] sm:$0xff]
    %v1470 = vld [vmem:[#allocation11 + $0x1d8] sm:$0xff]
    %v1471 = vld [vmem:[#allocation11 + $0x1e0] sm:$0xff]
    %v1472 = vld [vmem:[#allocation11 + $0x1e8] sm:$0xff]
    %v1473 = vld [vmem:[#allocation11 + $0x1f0] sm:$0xff]
    %v1474 = vld [vmem:[#allocation11 + $0x1f8] sm:$0xff]
    %v1475 = vld [vmem:[#allocation11 + $0x200] sm:$0xff]
    %v1476 = vld [vmem:[#allocation11 + $0x208] sm:$0xff]
    %v1477 = vld [vmem:[#allocation11 + $0x210] sm:$0xff]
    %v1478 = vld [vmem:[#allocation11 + $0x218] sm:$0xff]
    %v1479 = vld [vmem:[#allocation11 + $0x220] sm:$0xff]
    %v1480 = vld [vmem:[#allocation11 + $0x228] sm:$0xff]
    %v1481 = vld [vmem:[#allocation11 + $0x230] sm:$0xff]
    %v1482 = vld [vmem:[#allocation11 + $0x238] sm:$0xff]
    %v1483 = vld [vmem:[#allocation11 + $0x240] sm:$0xff]
    %v1484 = vld [vmem:[#allocation11 + $0x248] sm:$0xff]
    %v1485 = vld [vmem:[#allocation11 + $0x250] sm:$0xff]
    %v1486 = vld [vmem:[#allocation11 + $0x258] sm:$0xff]
    %v1487 = vld [vmem:[#allocation11 + $0x260] sm:$0xff]
    %v1488 = vld [vmem:[#allocation11 + $0x268] sm:$0xff]
    %v1489 = vld [vmem:[#allocation11 + $0x270] sm:$0xff]
    %v1490 = vld [vmem:[#allocation11 + $0x278] sm:$0xff]
    %v1491 = vld [vmem:[#allocation11 + $0x280] sm:$0xff]
    %v1492 = vld [vmem:[#allocation11 + $0x288] sm:$0xff]
    %v1493 = vld [vmem:[#allocation11 + $0x290] sm:$0xff]
    %v1494 = vld [vmem:[#allocation11 + $0x298] sm:$0xff]
    %v1495 = vld [vmem:[#allocation11 + $0x2a0] sm:$0xff]
    %v1496 = vld [vmem:[#allocation11 + $0x2a8] sm:$0xff]
    %v1497 = vld [vmem:[#allocation11 + $0x2b0] sm:$0xff]
    %v1498 = vld [vmem:[#allocation11 + $0x2b8] sm:$0xff]
    %v1499 = vld [vmem:[#allocation11 + $0x2c0] sm:$0xff]
    %v1500 = vld [vmem:[#allocation11 + $0x2c8] sm:$0xff]
    %v1501 = vld [vmem:[#allocation11 + $0x2d0] sm:$0xff]
    %v1502 = vld [vmem:[#allocation11 + $0x2d8] sm:$0xff]
    %v1503 = vld [vmem:[#allocation11 + $0x2e0] sm:$0xff]
    %v1504 = vld [vmem:[#allocation11 + $0x2e8] sm:$0xff]
    %v1505 = vld [vmem:[#allocation11 + $0x2f0] sm:$0xff]
    %v1506 = vld [vmem:[#allocation11 + $0x2f8] sm:$0xff]
    %v1507 = vld [vmem:[#allocation11 + $0x300] sm:$0xff]
    %v1508 = vld [vmem:[#allocation11 + $0x308] sm:$0xff]
    %v1509 = vld [vmem:[#allocation11 + $0x310] sm:$0xff]
    %v1510 = vld [vmem:[#allocation11 + $0x318] sm:$0xff]
    %v1511 = vld [vmem:[#allocation11 + $0x320] sm:$0xff]
    %v1512 = vld [vmem:[#allocation11 + $0x328] sm:$0xff]
    %v1513 = vld [vmem:[#allocation11 + $0x330] sm:$0xff]
    %v1514 = vld [vmem:[#allocation11 + $0x338] sm:$0xff]
    %v1515 = vld [vmem:[#allocation11 + $0x340] sm:$0xff]
    %v1516 = vld [vmem:[#allocation11 + $0x348] sm:$0xff]
    %v1517 = vld [vmem:[#allocation11 + $0x350] sm:$0xff]
    %v1518 = vld [vmem:[#allocation11 + $0x358] sm:$0xff]
    %v1519 = vld [vmem:[#allocation11 + $0x360] sm:$0xff]
    %v1520 = vld [vmem:[#allocation11 + $0x368] sm:$0xff]
    %v1521 = vld [vmem:[#allocation11 + $0x370] sm:$0xff]
    %v1522 = vld [vmem:[#allocation11 + $0x378] sm:$0xff]
    %v1523 = vld [vmem:[#allocation11 + $0x380] sm:$0xff]
    %v1524 = vld [vmem:[#allocation11 + $0x388] sm:$0xff]
    %v1525 = vld [vmem:[#allocation11 + $0x390] sm:$0xff]
    %v1526 = vld [vmem:[#allocation11 + $0x398] sm:$0xff]
    %v1527 = vld [vmem:[#allocation11 + $0x3a0] sm:$0xff]
    %v1528 = vld [vmem:[#allocation11 + $0x3a8] sm:$0xff]
    %v1529 = vld [vmem:[#allocation11 + $0x3b0] sm:$0xff]
    %v1530 = vld [vmem:[#allocation11 + $0x3b8] sm:$0xff]
    %v1531 = vld [vmem:[#allocation11 + $0x3c0] sm:$0xff]
    %v1532 = vld [vmem:[#allocation11 + $0x3c8] sm:$0xff]
    %v1533 = vld [vmem:[#allocation11 + $0x3d0] sm:$0xff]
    %v1534 = vld [vmem:[#allocation11 + $0x3d8] sm:$0xff]
    %v1535 = vld [vmem:[#allocation11 + $0x3e0] sm:$0xff]
    %v1536 = vld [vmem:[#allocation11 + $0x3e8] sm:$0xff]
    %v1537 = vld [vmem:[#allocation11 + $0x3f0] sm:$0xff]
    %v1538 = vld [vmem:[#allocation11 + $0x3f8] sm:$0xff]
    %v1539 = vld [vmem:[%s8] sm:$0xf]
    %v1541 = vlaneseq
    %v1542 = vshrl.u32 %v1541, 7
    %v1543 = vsub.s32 0, %v1542
    %v1544 = vrot.slane %v1539, %v1543
    %v1545 = vlaneseq
    %v1546 = vshrl.u32 %v1545, 7
    %v1547 = vsub.s32 1, %v1546
    %v1548 = vrot.slane %v1539, %v1547
    %v1549 = vlaneseq
    %v1550 = vshrl.u32 %v1549, 7
    %v1551 = vsub.s32 2, %v1550
    %v1552 = vrot.slane %v1539, %v1551
    %v1553 = vlaneseq
    %v1554 = vshrl.u32 %v1553, 7
    %v1555 = vsub.s32 3, %v1554
    %v1556 = vrot.slane %v1539, %v1555
    %v1689 = vunpack.c.l.b16 %v1411
    %v1690 = vunpack.c.h.b16 %v1411
    %v1691 = vunpack.c.l.b16 %v1412
    %v1692 = vunpack.c.h.b16 %v1412
    %v1693 = vunpack.c.l.b16 %v1413
    %v1694 = vunpack.c.h.b16 %v1413
    %v1695 = vunpack.c.l.b16 %v1414
    %v1696 = vunpack.c.h.b16 %v1414
    %v1697 = vunpack.c.l.b16 %v1415
    %v1698 = vunpack.c.h.b16 %v1415
    %v1699 = vunpack.c.l.b16 %v1416
    %v1700 = vunpack.c.h.b16 %v1416
    %v1701 = vunpack.c.l.b16 %v1417
    %v1702 = vunpack.c.h.b16 %v1417
    %v1703 = vunpack.c.l.b16 %v1418
    %v1704 = vunpack.c.h.b16 %v1418
    %v1705 = vunpack.c.l.b16 %v1419
    %v1706 = vunpack.c.h.b16 %v1419
    %v1707 = vunpack.c.l.b16 %v1420
    %v1708 = vunpack.c.h.b16 %v1420
    %v1709 = vunpack.c.l.b16 %v1421
    %v1710 = vunpack.c.h.b16 %v1421
    %v1711 = vunpack.c.l.b16 %v1422
    %v1712 = vunpack.c.h.b16 %v1422
    %v1713 = vunpack.c.l.b16 %v1423
    %v1714 = vunpack.c.h.b16 %v1423
    %v1715 = vunpack.c.l.b16 %v1424
    %v1716 = vunpack.c.h.b16 %v1424
    %v1717 = vunpack.c.l.b16 %v1425
    %v1718 = vunpack.c.h.b16 %v1425
    %v1719 = vunpack.c.l.b16 %v1426
    %v1720 = vunpack.c.h.b16 %v1426
    %v1721 = vunpack.c.l.b16 %v1427
    %v1722 = vunpack.c.h.b16 %v1427
    %v1723 = vunpack.c.l.b16 %v1428
    %v1724 = vunpack.c.h.b16 %v1428
    %v1725 = vunpack.c.l.b16 %v1429
    %v1726 = vunpack.c.h.b16 %v1429
    %v1727 = vunpack.c.l.b16 %v1430
    %v1728 = vunpack.c.h.b16 %v1430
    %v1729 = vunpack.c.l.b16 %v1431
    %v1730 = vunpack.c.h.b16 %v1431
    %v1731 = vunpack.c.l.b16 %v1432
    %v1732 = vunpack.c.h.b16 %v1432
    %v1733 = vunpack.c.l.b16 %v1433
    %v1734 = vunpack.c.h.b16 %v1433
    %v1735 = vunpack.c.l.b16 %v1434
    %v1736 = vunpack.c.h.b16 %v1434
    %v1737 = vunpack.c.l.b16 %v1435
    %v1738 = vunpack.c.h.b16 %v1435
    %v1739 = vunpack.c.l.b16 %v1436
    %v1740 = vunpack.c.h.b16 %v1436
    %v1741 = vunpack.c.l.b16 %v1437
    %v1742 = vunpack.c.h.b16 %v1437
    %v1743 = vunpack.c.l.b16 %v1438
    %v1744 = vunpack.c.h.b16 %v1438
    %v1745 = vunpack.c.l.b16 %v1439
    %v1746 = vunpack.c.h.b16 %v1439
    %v1747 = vunpack.c.l.b16 %v1440
    %v1748 = vunpack.c.h.b16 %v1440
    %v1749 = vunpack.c.l.b16 %v1441
    %v1750 = vunpack.c.h.b16 %v1441
    %v1751 = vunpack.c.l.b16 %v1442
    %v1752 = vunpack.c.h.b16 %v1442
    %v1753 = vunpack.c.l.b16 %v1443
    %v1754 = vunpack.c.h.b16 %v1443
    %v1755 = vunpack.c.l.b16 %v1444
    %v1756 = vunpack.c.h.b16 %v1444
    %v1757 = vunpack.c.l.b16 %v1445
    %v1758 = vunpack.c.h.b16 %v1445
    %v1759 = vunpack.c.l.b16 %v1446
    %v1760 = vunpack.c.h.b16 %v1446
    %v1761 = vunpack.c.l.b16 %v1447
    %v1762 = vunpack.c.h.b16 %v1447
    %v1763 = vunpack.c.l.b16 %v1448
    %v1764 = vunpack.c.h.b16 %v1448
    %v1765 = vunpack.c.l.b16 %v1449
    %v1766 = vunpack.c.h.b16 %v1449
    %v1767 = vunpack.c.l.b16 %v1450
    %v1768 = vunpack.c.h.b16 %v1450
    %v1769 = vunpack.c.l.b16 %v1451
    %v1770 = vunpack.c.h.b16 %v1451
    %v1771 = vunpack.c.l.b16 %v1452
    %v1772 = vunpack.c.h.b16 %v1452
    %v1773 = vunpack.c.l.b16 %v1453
    %v1774 = vunpack.c.h.b16 %v1453
    %v1775 = vunpack.c.l.b16 %v1454
    %v1776 = vunpack.c.h.b16 %v1454
    %v1777 = vunpack.c.l.b16 %v1455
    %v1778 = vunpack.c.h.b16 %v1455
    %v1779 = vunpack.c.l.b16 %v1456
    %v1780 = vunpack.c.h.b16 %v1456
    %v1781 = vunpack.c.l.b16 %v1457
    %v1782 = vunpack.c.h.b16 %v1457
    %v1783 = vunpack.c.l.b16 %v1458
    %v1784 = vunpack.c.h.b16 %v1458
    %v1785 = vunpack.c.l.b16 %v1459
    %v1786 = vunpack.c.h.b16 %v1459
    %v1787 = vunpack.c.l.b16 %v1460
    %v1788 = vunpack.c.h.b16 %v1460
    %v1789 = vunpack.c.l.b16 %v1461
    %v1790 = vunpack.c.h.b16 %v1461
    %v1791 = vunpack.c.l.b16 %v1462
    %v1792 = vunpack.c.h.b16 %v1462
    %v1793 = vunpack.c.l.b16 %v1463
    %v1794 = vunpack.c.h.b16 %v1463
    %v1795 = vunpack.c.l.b16 %v1464
    %v1796 = vunpack.c.h.b16 %v1464
    %v1797 = vunpack.c.l.b16 %v1465
    %v1798 = vunpack.c.h.b16 %v1465
    %v1799 = vunpack.c.l.b16 %v1466
    %v1800 = vunpack.c.h.b16 %v1466
    %v1801 = vunpack.c.l.b16 %v1467
    %v1802 = vunpack.c.h.b16 %v1467
    %v1803 = vunpack.c.l.b16 %v1468
    %v1804 = vunpack.c.h.b16 %v1468
    %v1805 = vunpack.c.l.b16 %v1469
    %v1806 = vunpack.c.h.b16 %v1469
    %v1807 = vunpack.c.l.b16 %v1470
    %v1808 = vunpack.c.h.b16 %v1470
    %v1809 = vunpack.c.l.b16 %v1471
    %v1810 = vunpack.c.h.b16 %v1471
    %v1811 = vunpack.c.l.b16 %v1472
    %v1812 = vunpack.c.h.b16 %v1472
    %v1813 = vunpack.c.l.b16 %v1473
    %v1814 = vunpack.c.h.b16 %v1473
    %v1815 = vunpack.c.l.b16 %v1474
    %v1816 = vunpack.c.h.b16 %v1474
    %v1817 = vunpack.c.l.b16 %v1475
    %v1818 = vunpack.c.h.b16 %v1475
    %v1819 = vunpack.c.l.b16 %v1476
    %v1820 = vunpack.c.h.b16 %v1476
    %v1821 = vunpack.c.l.b16 %v1477
    %v1822 = vunpack.c.h.b16 %v1477
    %v1823 = vunpack.c.l.b16 %v1478
    %v1824 = vunpack.c.h.b16 %v1478
    %v1825 = vunpack.c.l.b16 %v1479
    %v1826 = vunpack.c.h.b16 %v1479
    %v1827 = vunpack.c.l.b16 %v1480
    %v1828 = vunpack.c.h.b16 %v1480
    %v1829 = vunpack.c.l.b16 %v1481
    %v1830 = vunpack.c.h.b16 %v1481
    %v1831 = vunpack.c.l.b16 %v1482
    %v1832 = vunpack.c.h.b16 %v1482
    %v1833 = vunpack.c.l.b16 %v1483
    %v1834 = vunpack.c.h.b16 %v1483
    %v1835 = vunpack.c.l.b16 %v1484
    %v1836 = vunpack.c.h.b16 %v1484
    %v1837 = vunpack.c.l.b16 %v1485
    %v1838 = vunpack.c.h.b16 %v1485
    %v1839 = vunpack.c.l.b16 %v1486
    %v1840 = vunpack.c.h.b16 %v1486
    %v1841 = vunpack.c.l.b16 %v1487
    %v1842 = vunpack.c.h.b16 %v1487
    %v1843 = vunpack.c.l.b16 %v1488
    %v1844 = vunpack.c.h.b16 %v1488
    %v1845 = vunpack.c.l.b16 %v1489
    %v1846 = vunpack.c.h.b16 %v1489
    %v1847 = vunpack.c.l.b16 %v1490
    %v1848 = vunpack.c.h.b16 %v1490
    %v1849 = vunpack.c.l.b16 %v1491
    %v1850 = vunpack.c.h.b16 %v1491
    %v1851 = vunpack.c.l.b16 %v1492
    %v1852 = vunpack.c.h.b16 %v1492
    %v1853 = vunpack.c.l.b16 %v1493
    %v1854 = vunpack.c.h.b16 %v1493
    %v1855 = vunpack.c.l.b16 %v1494
    %v1856 = vunpack.c.h.b16 %v1494
    %v1857 = vunpack.c.l.b16 %v1495
    %v1858 = vunpack.c.h.b16 %v1495
    %v1859 = vunpack.c.l.b16 %v1496
    %v1860 = vunpack.c.h.b16 %v1496
    %v1861 = vunpack.c.l.b16 %v1497
    %v1862 = vunpack.c.h.b16 %v1497
    %v1863 = vunpack.c.l.b16 %v1498
    %v1864 = vunpack.c.h.b16 %v1498
    %v1865 = vunpack.c.l.b16 %v1499
    %v1866 = vunpack.c.h.b16 %v1499
    %v1867 = vunpack.c.l.b16 %v1500
    %v1868 = vunpack.c.h.b16 %v1500
    %v1869 = vunpack.c.l.b16 %v1501
    %v1870 = vunpack.c.h.b16 %v1501
    %v1871 = vunpack.c.l.b16 %v1502
    %v1872 = vunpack.c.h.b16 %v1502
    %v1873 = vunpack.c.l.b16 %v1503
    %v1874 = vunpack.c.h.b16 %v1503
    %v1875 = vunpack.c.l.b16 %v1504
    %v1876 = vunpack.c.h.b16 %v1504
    %v1877 = vunpack.c.l.b16 %v1505
    %v1878 = vunpack.c.h.b16 %v1505
    %v1879 = vunpack.c.l.b16 %v1506
    %v1880 = vunpack.c.h.b16 %v1506
    %v1881 = vunpack.c.l.b16 %v1507
    %v1882 = vunpack.c.h.b16 %v1507
    %v1883 = vunpack.c.l.b16 %v1508
    %v1884 = vunpack.c.h.b16 %v1508
    %v1885 = vunpack.c.l.b16 %v1509
    %v1886 = vunpack.c.h.b16 %v1509
    %v1887 = vunpack.c.l.b16 %v1510
    %v1888 = vunpack.c.h.b16 %v1510
    %v1889 = vunpack.c.l.b16 %v1511
    %v1890 = vunpack.c.h.b16 %v1511
    %v1891 = vunpack.c.l.b16 %v1512
    %v1892 = vunpack.c.h.b16 %v1512
    %v1893 = vunpack.c.l.b16 %v1513
    %v1894 = vunpack.c.h.b16 %v1513
    %v1895 = vunpack.c.l.b16 %v1514
    %v1896 = vunpack.c.h.b16 %v1514
    %v1897 = vunpack.c.l.b16 %v1515
    %v1898 = vunpack.c.h.b16 %v1515
    %v1899 = vunpack.c.l.b16 %v1516
    %v1900 = vunpack.c.h.b16 %v1516
    %v1901 = vunpack.c.l.b16 %v1517
    %v1902 = vunpack.c.h.b16 %v1517
    %v1903 = vunpack.c.l.b16 %v1518
    %v1904 = vunpack.c.h.b16 %v1518
    %v1905 = vunpack.c.l.b16 %v1519
    %v1906 = vunpack.c.h.b16 %v1519
    %v1907 = vunpack.c.l.b16 %v1520
    %v1908 = vunpack.c.h.b16 %v1520
    %v1909 = vunpack.c.l.b16 %v1521
    %v1910 = vunpack.c.h.b16 %v1521
    %v1911 = vunpack.c.l.b16 %v1522
    %v1912 = vunpack.c.h.b16 %v1522
    %v1913 = vunpack.c.l.b16 %v1523
    %v1914 = vunpack.c.h.b16 %v1523
    %v1915 = vunpack.c.l.b16 %v1524
    %v1916 = vunpack.c.h.b16 %v1524
    %v1917 = vunpack.c.l.b16 %v1525
    %v1918 = vunpack.c.h.b16 %v1525
    %v1919 = vunpack.c.l.b16 %v1526
    %v1920 = vunpack.c.h.b16 %v1526
    %v1921 = vunpack.c.l.b16 %v1527
    %v1922 = vunpack.c.h.b16 %v1527
    %v1923 = vunpack.c.l.b16 %v1528
    %v1924 = vunpack.c.h.b16 %v1528
    %v1925 = vunpack.c.l.b16 %v1529
    %v1926 = vunpack.c.h.b16 %v1529
    %v1927 = vunpack.c.l.b16 %v1530
    %v1928 = vunpack.c.h.b16 %v1530
    %v1929 = vunpack.c.l.b16 %v1531
    %v1930 = vunpack.c.h.b16 %v1531
    %v1931 = vunpack.c.l.b16 %v1532
    %v1932 = vunpack.c.h.b16 %v1532
    %v1933 = vunpack.c.l.b16 %v1533
    %v1934 = vunpack.c.h.b16 %v1533
    %v1935 = vunpack.c.l.b16 %v1534
    %v1936 = vunpack.c.h.b16 %v1534
    %v1937 = vunpack.c.l.b16 %v1535
    %v1938 = vunpack.c.h.b16 %v1535
    %v1939 = vunpack.c.l.b16 %v1536
    %v1940 = vunpack.c.h.b16 %v1536
    %v1941 = vunpack.c.l.b16 %v1537
    %v1942 = vunpack.c.h.b16 %v1537
    %v1943 = vunpack.c.l.b16 %v1538
    %v1944 = vunpack.c.h.b16 %v1538
    %v1945 = vpack.c.b16 %v1693, %v1689
    %v1946 = vpack.c.b16 %v1694, %v1690
    %v1947 = vpack.c.b16 %v1695, %v1691
    %v1948 = vpack.c.b16 %v1696, %v1692
    %v1949 = vpack.c.b16 %v1701, %v1697
    %v1950 = vpack.c.b16 %v1702, %v1698
    %v1951 = vpack.c.b16 %v1703, %v1699
    %v1952 = vpack.c.b16 %v1704, %v1700
    %v1953 = vpack.c.b16 %v1709, %v1705
    %v1954 = vpack.c.b16 %v1710, %v1706
    %v1955 = vpack.c.b16 %v1711, %v1707
    %v1956 = vpack.c.b16 %v1712, %v1708
    %v1957 = vpack.c.b16 %v1717, %v1713
    %v1958 = vpack.c.b16 %v1718, %v1714
    %v1959 = vpack.c.b16 %v1719, %v1715
    %v1960 = vpack.c.b16 %v1720, %v1716
    %v1961 = vpack.c.b16 %v1725, %v1721
    %v1962 = vpack.c.b16 %v1726, %v1722
    %v1963 = vpack.c.b16 %v1727, %v1723
    %v1964 = vpack.c.b16 %v1728, %v1724
    %v1965 = vpack.c.b16 %v1733, %v1729
    %v1966 = vpack.c.b16 %v1734, %v1730
    %v1967 = vpack.c.b16 %v1735, %v1731
    %v1968 = vpack.c.b16 %v1736, %v1732
    %v1969 = vpack.c.b16 %v1741, %v1737
    %v1970 = vpack.c.b16 %v1742, %v1738
    %v1971 = vpack.c.b16 %v1743, %v1739
    %v1972 = vpack.c.b16 %v1744, %v1740
    %v1973 = vpack.c.b16 %v1749, %v1745
    %v1974 = vpack.c.b16 %v1750, %v1746
    %v1975 = vpack.c.b16 %v1751, %v1747
    %v1976 = vpack.c.b16 %v1752, %v1748
    %v1977 = vpack.c.b16 %v1757, %v1753
    %v1978 = vpack.c.b16 %v1758, %v1754
    %v1979 = vpack.c.b16 %v1759, %v1755
    %v1980 = vpack.c.b16 %v1760, %v1756
    %v1981 = vpack.c.b16 %v1765, %v1761
    %v1982 = vpack.c.b16 %v1766, %v1762
    %v1983 = vpack.c.b16 %v1767, %v1763
    %v1984 = vpack.c.b16 %v1768, %v1764
    %v1985 = vpack.c.b16 %v1773, %v1769
    %v1986 = vpack.c.b16 %v1774, %v1770
    %v1987 = vpack.c.b16 %v1775, %v1771
    %v1988 = vpack.c.b16 %v1776, %v1772
    %v1989 = vpack.c.b16 %v1781, %v1777
    %v1990 = vpack.c.b16 %v1782, %v1778
    %v1991 = vpack.c.b16 %v1783, %v1779
    %v1992 = vpack.c.b16 %v1784, %v1780
    %v1993 = vpack.c.b16 %v1789, %v1785
    %v1994 = vpack.c.b16 %v1790, %v1786
    %v1995 = vpack.c.b16 %v1791, %v1787
    %v1996 = vpack.c.b16 %v1792, %v1788
    %v1997 = vpack.c.b16 %v1797, %v1793
    %v1998 = vpack.c.b16 %v1798, %v1794
    %v1999 = vpack.c.b16 %v1799, %v1795
    %v2000 = vpack.c.b16 %v1800, %v1796
    %v2001 = vpack.c.b16 %v1805, %v1801
    %v2002 = vpack.c.b16 %v1806, %v1802
    %v2003 = vpack.c.b16 %v1807, %v1803
    %v2004 = vpack.c.b16 %v1808, %v1804
    %v2005 = vpack.c.b16 %v1813, %v1809
    %v2006 = vpack.c.b16 %v1814, %v1810
    %v2007 = vpack.c.b16 %v1815, %v1811
    %v2008 = vpack.c.b16 %v1816, %v1812
    %v2009 = vpack.c.b16 %v1821, %v1817
    %v2010 = vpack.c.b16 %v1822, %v1818
    %v2011 = vpack.c.b16 %v1823, %v1819
    %v2012 = vpack.c.b16 %v1824, %v1820
    %v2013 = vpack.c.b16 %v1829, %v1825
    %v2014 = vpack.c.b16 %v1830, %v1826
    %v2015 = vpack.c.b16 %v1831, %v1827
    %v2016 = vpack.c.b16 %v1832, %v1828
    %v2017 = vpack.c.b16 %v1837, %v1833
    %v2018 = vpack.c.b16 %v1838, %v1834
    %v2019 = vpack.c.b16 %v1839, %v1835
    %v2020 = vpack.c.b16 %v1840, %v1836
    %v2021 = vpack.c.b16 %v1845, %v1841
    %v2022 = vpack.c.b16 %v1846, %v1842
    %v2023 = vpack.c.b16 %v1847, %v1843
    %v2024 = vpack.c.b16 %v1848, %v1844
    %v2025 = vpack.c.b16 %v1853, %v1849
    %v2026 = vpack.c.b16 %v1854, %v1850
    %v2027 = vpack.c.b16 %v1855, %v1851
    %v2028 = vpack.c.b16 %v1856, %v1852
    %v2029 = vpack.c.b16 %v1861, %v1857
    %v2030 = vpack.c.b16 %v1862, %v1858
    %v2031 = vpack.c.b16 %v1863, %v1859
    %v2032 = vpack.c.b16 %v1864, %v1860
    %v2033 = vpack.c.b16 %v1869, %v1865
    %v2034 = vpack.c.b16 %v1870, %v1866
    %v2035 = vpack.c.b16 %v1871, %v1867
    %v2036 = vpack.c.b16 %v1872, %v1868
    %v2037 = vpack.c.b16 %v1877, %v1873
    %v2038 = vpack.c.b16 %v1878, %v1874
    %v2039 = vpack.c.b16 %v1879, %v1875
    %v2040 = vpack.c.b16 %v1880, %v1876
    %v2041 = vpack.c.b16 %v1885, %v1881
    %v2042 = vpack.c.b16 %v1886, %v1882
    %v2043 = vpack.c.b16 %v1887, %v1883
    %v2044 = vpack.c.b16 %v1888, %v1884
    %v2045 = vpack.c.b16 %v1893, %v1889
    %v2046 = vpack.c.b16 %v1894, %v1890
    %v2047 = vpack.c.b16 %v1895, %v1891
    %v2048 = vpack.c.b16 %v1896, %v1892
    %v2049 = vpack.c.b16 %v1901, %v1897
    %v2050 = vpack.c.b16 %v1902, %v1898
    %v2051 = vpack.c.b16 %v1903, %v1899
    %v2052 = vpack.c.b16 %v1904, %v1900
    %v2053 = vpack.c.b16 %v1909, %v1905
    %v2054 = vpack.c.b16 %v1910, %v1906
    %v2055 = vpack.c.b16 %v1911, %v1907
    %v2056 = vpack.c.b16 %v1912, %v1908
    %v2057 = vpack.c.b16 %v1917, %v1913
    %v2058 = vpack.c.b16 %v1918, %v1914
    %v2059 = vpack.c.b16 %v1919, %v1915
    %v2060 = vpack.c.b16 %v1920, %v1916
    %v2061 = vpack.c.b16 %v1925, %v1921
    %v2062 = vpack.c.b16 %v1926, %v1922
    %v2063 = vpack.c.b16 %v1927, %v1923
    %v2064 = vpack.c.b16 %v1928, %v1924
    %v2065 = vpack.c.b16 %v1933, %v1929
    %v2066 = vpack.c.b16 %v1934, %v1930
    %v2067 = vpack.c.b16 %v1935, %v1931
    %v2068 = vpack.c.b16 %v1936, %v1932
    %v2069 = vpack.c.b16 %v1941, %v1937
    %v2070 = vpack.c.b16 %v1942, %v1938
    %v2071 = vpack.c.b16 %v1943, %v1939
    %v2072 = vpack.c.b16 %v1944, %v1940
    %2201 = vmatprep.subr.bf16.mxu0 %v1946
    %2202 = vmatpush1.bf16.msra.mxu0 %v1945
    %2203 = vmatprep.subr.bf16.mxu0 %v1950
    %2204 = vmatpush1.bf16.msra.mxu0 %v1949
    %2205 = vmatprep.subr.bf16.mxu0 %v1954
    %2206 = vmatpush1.bf16.msra.mxu0 %v1953
    %2207 = vmatprep.subr.bf16.mxu0 %v1958
    %2208 = vmatpush1.bf16.msra.mxu0 %v1957
    %2209 = vmatprep.subr.bf16.mxu0 %v1962
    %2210 = vmatpush1.bf16.msra.mxu0 %v1961
    %2211 = vmatprep.subr.bf16.mxu0 %v1966
    %2212 = vmatpush1.bf16.msra.mxu0 %v1965
    %2213 = vmatprep.subr.bf16.mxu0 %v1970
    %2214 = vmatpush1.bf16.msra.mxu0 %v1969
    %2215 = vmatprep.subr.bf16.mxu0 %v1974
    %2216 = vmatpush1.bf16.msra.mxu0 %v1973
    %2217 = vmatprep.subr.bf16.mxu0 %v1978
    %2218 = vmatpush1.bf16.msra.mxu0 %v1977
    %2219 = vmatprep.subr.bf16.mxu0 %v1982
    %2220 = vmatpush1.bf16.msra.mxu0 %v1981
    %2221 = vmatprep.subr.bf16.mxu0 %v1986
    %2222 = vmatpush1.bf16.msra.mxu0 %v1985
    %2223 = vmatprep.subr.bf16.mxu0 %v1990
    %2224 = vmatpush1.bf16.msra.mxu0 %v1989
    %2225 = vmatprep.subr.bf16.mxu0 %v1994
    %2226 = vmatpush1.bf16.msra.mxu0 %v1993
    %2227 = vmatprep.subr.bf16.mxu0 %v1998
    %2228 = vmatpush1.bf16.msra.mxu0 %v1997
    %2229 = vmatprep.subr.bf16.mxu0 %v2002
    %2230 = vmatpush1.bf16.msra.mxu0 %v2001
    %2231 = vmatprep.subr.bf16.mxu0 %v2006
    %2232 = vmatpush1.bf16.msra.mxu0 %v2005
    %2233 = vmatprep.mubr.bf16.mxu0 %v1408
    %2234 = vmatmul.mubr.bf16.gmra.mrb[0].mxu0 %v1407
    %v2235 = vpop.f32.mrb[0].mxu0
    %v2236 = vadd.f32 %v1544, %v2235
    %v2237 = vpop.f32.mrb[0].mxu0
    %v2238 = vadd.f32 %v1548, %v2237
    %v2239 = vpop.f32.mrb[0].mxu0
    %v2240 = vadd.f32 %v1544, %v2239
    %v2241 = vpop.f32.mrb[0].mxu0
    %v2242 = vadd.f32 %v1548, %v2241
    %2243 = vdwg.mxu0
    %2244 = vmatprep.subr.bf16.mxu0 %v2010
    %2245 = vmatpush1.bf16.msra.mxu0 %v2009
    %2246 = vmatprep.subr.bf16.mxu0 %v2014
    %2247 = vmatpush1.bf16.msra.mxu0 %v2013
    %2248 = vmatprep.subr.bf16.mxu0 %v2018
    %2249 = vmatpush1.bf16.msra.mxu0 %v2017
    %2250 = vmatprep.subr.bf16.mxu0 %v2022
    %2251 = vmatpush1.bf16.msra.mxu0 %v2021
    %2252 = vmatprep.subr.bf16.mxu0 %v2026
    %2253 = vmatpush1.bf16.msra.mxu0 %v2025
    %2254 = vmatprep.subr.bf16.mxu0 %v2030
    %2255 = vmatpush1.bf16.msra.mxu0 %v2029
    %2256 = vmatprep.subr.bf16.mxu0 %v2034
    %2257 = vmatpush1.bf16.msra.mxu0 %v2033
    %2258 = vmatprep.subr.bf16.mxu0 %v2038
    %2259 = vmatpush1.bf16.msra.mxu0 %v2037
    %2260 = vmatprep.subr.bf16.mxu0 %v2042
    %2261 = vmatpush1.bf16.msra.mxu0 %v2041
    %2262 = vmatprep.subr.bf16.mxu0 %v2046
    %2263 = vmatpush1.bf16.msra.mxu0 %v2045
    %2264 = vmatprep.subr.bf16.mxu0 %v2050
    %2265 = vmatpush1.bf16.msra.mxu0 %v2049
    %2266 = vmatprep.subr.bf16.mxu0 %v2054
    %2267 = vmatpush1.bf16.msra.mxu0 %v2053
    %2268 = vmatprep.subr.bf16.mxu0 %v2058
    %2269 = vmatpush1.bf16.msra.mxu0 %v2057
    %2270 = vmatprep.subr.bf16.mxu0 %v2062
    %2271 = vmatpush1.bf16.msra.mxu0 %v2061
    %2272 = vmatprep.subr.bf16.mxu0 %v2066
    %2273 = vmatpush1.bf16.msra.mxu0 %v2065
    %2274 = vmatprep.subr.bf16.mxu0 %v2070
    %2275 = vmatpush1.bf16.msra.mxu0 %v2069
    %2276 = vmatprep.mubr.bf16.mxu0 %v1410
    %2277 = vmatmul.mubr.bf16.gmra.mrb[0].mxu0 %v1409
    %v2278 = vpop.f32.mrb[0].mxu0
    %v2279 = vadd.f32 %v2236, %v2278
    %v2280 = vpop.f32.mrb[0].mxu0
    %v2281 = vadd.f32 %v2238, %v2280
    %v2282 = vpop.f32.mrb[0].mxu0
    %v2283 = vadd.f32 %v2240, %v2282
    %v2284 = vpop.f32.mrb[0].mxu0
    %v2285 = vadd.f32 %v2242, %v2284
    %2286 = vdwg.mxu0
    %2287 = vmatprep.subr.bf16.mxu0 %v1948
    %2288 = vmatpush1.bf16.msra.mxu0 %v1947
    %2289 = vmatprep.subr.bf16.mxu0 %v1952
    %2290 = vmatpush1.bf16.msra.mxu0 %v1951
    %2291 = vmatprep.subr.bf16.mxu0 %v1956
    %2292 = vmatpush1.bf16.msra.mxu0 %v1955
    %2293 = vmatprep.subr.bf16.mxu0 %v1960
    %2294 = vmatpush1.bf16.msra.mxu0 %v1959
    %2295 = vmatprep.subr.bf16.mxu0 %v1964
    %2296 = vmatpush1.bf16.msra.mxu0 %v1963
    %2297 = vmatprep.subr.bf16.mxu0 %v1968
    %2298 = vmatpush1.bf16.msra.mxu0 %v1967
    %2299 = vmatprep.subr.bf16.mxu0 %v1972
    %2300 = vmatpush1.bf16.msra.mxu0 %v1971
    %2301 = vmatprep.subr.bf16.mxu0 %v1976
    %2302 = vmatpush1.bf16.msra.mxu0 %v1975
    %2303 = vmatprep.subr.bf16.mxu0 %v1980
    %2304 = vmatpush1.bf16.msra.mxu0 %v1979
    %2305 = vmatprep.subr.bf16.mxu0 %v1984
    %2306 = vmatpush1.bf16.msra.mxu0 %v1983
    %2307 = vmatprep.subr.bf16.mxu0 %v1988
    %2308 = vmatpush1.bf16.msra.mxu0 %v1987
    %2309 = vmatprep.subr.bf16.mxu0 %v1992
    %2310 = vmatpush1.bf16.msra.mxu0 %v1991
    %2311 = vmatprep.subr.bf16.mxu0 %v1996
    %2312 = vmatpush1.bf16.msra.mxu0 %v1995
    %2313 = vmatprep.subr.bf16.mxu0 %v2000
    %2314 = vmatpush1.bf16.msra.mxu0 %v1999
    %2315 = vmatprep.subr.bf16.mxu0 %v2004
    %2316 = vmatpush1.bf16.msra.mxu0 %v2003
    %2317 = vmatprep.subr.bf16.mxu0 %v2008
    %2318 = vmatpush1.bf16.msra.mxu0 %v2007
    %2319 = vmatprep.mubr.bf16.mxu0 %v1408
    %2320 = vmatmul.mubr.bf16.gmra.mrb[0].mxu0 %v1407
    %v2321 = vpop.f32.mrb[0].mxu0
    %v2322 = vadd.f32 %v1552, %v2321
    %v2323 = vpop.f32.mrb[0].mxu0
    %v2324 = vadd.f32 %v1556, %v2323
    %v2325 = vpop.f32.mrb[0].mxu0
    %v2326 = vadd.f32 %v1552, %v2325
    %v2327 = vpop.f32.mrb[0].mxu0
    %v2328 = vadd.f32 %v1556, %v2327
    %2329 = vdwg.mxu0
    %2330 = vmatprep.subr.bf16.mxu0 %v2012
    %2331 = vmatpush1.bf16.msra.mxu0 %v2011
    %2332 = vmatprep.subr.bf16.mxu0 %v2016
    %2333 = vmatpush1.bf16.msra.mxu0 %v2015
    %2334 = vmatprep.subr.bf16.mxu0 %v2020
    %2335 = vmatpush1.bf16.msra.mxu0 %v2019
    %2336 = vmatprep.subr.bf16.mxu0 %v2024
    %2337 = vmatpush1.bf16.msra.mxu0 %v2023
    %2338 = vmatprep.subr.bf16.mxu0 %v2028
    %2339 = vmatpush1.bf16.msra.mxu0 %v2027
    %2340 = vmatprep.subr.bf16.mxu0 %v2032
    %2341 = vmatpush1.bf16.msra.mxu0 %v2031
    %2342 = vmatprep.subr.bf16.mxu0 %v2036
    %2343 = vmatpush1.bf16.msra.mxu0 %v2035
    %2344 = vmatprep.subr.bf16.mxu0 %v2040
    %2345 = vmatpush1.bf16.msra.mxu0 %v2039
    %2346 = vmatprep.subr.bf16.mxu0 %v2044
    %2347 = vmatpush1.bf16.msra.mxu0 %v2043
    %2348 = vmatprep.subr.bf16.mxu0 %v2048
    %2349 = vmatpush1.bf16.msra.mxu0 %v2047
    %2350 = vmatprep.subr.bf16.mxu0 %v2052
    %2351 = vmatpush1.bf16.msra.mxu0 %v2051
    %2352 = vmatprep.subr.bf16.mxu0 %v2056
    %2353 = vmatpush1.bf16.msra.mxu0 %v2055
    %2354 = vmatprep.subr.bf16.mxu0 %v2060
    %2355 = vmatpush1.bf16.msra.mxu0 %v2059
    %2356 = vmatprep.subr.bf16.mxu0 %v2064
    %2357 = vmatpush1.bf16.msra.mxu0 %v2063
    %2358 = vmatprep.subr.bf16.mxu0 %v2068
    %2359 = vmatpush1.bf16.msra.mxu0 %v2067
    %2360 = vmatprep.subr.bf16.mxu0 %v2072
    %2361 = vmatpush1.bf16.msra.mxu0 %v2071
    %2362 = vmatprep.mubr.bf16.mxu0 %v1410
    %2363 = vmatmul.mubr.bf16.gmra.mrb[0].mxu0 %v1409
    %v2364 = vpop.f32.mrb[0].mxu0
    %v2365 = vadd.f32 %v2322, %v2364
    %v2366 = vpop.f32.mrb[0].mxu0
    %v2367 = vadd.f32 %v2324, %v2366
    %v2368 = vpop.f32.mrb[0].mxu0
    %v2369 = vadd.f32 %v2326, %v2368
    %v2370 = vpop.f32.mrb[0].mxu0
    %v2371 = vadd.f32 %v2328, %v2370
    %2372 = vdwg.mxu0
    %v2373 = vmul.f32 %v2279, 0.01
    %v2374 = vmul.f32 %v2281, 0.01
    %v2375 = vmul.f32 %v2365, 0.01
    %v2376 = vmul.f32 %v2367, 0.01
    %v2377 = vmul.f32 %v2283, 0.01
    %v2378 = vmul.f32 %v2285, 0.01
    %v2379 = vmul.f32 %v2369, 0.01
    %v2380 = vmul.f32 %v2371, 0.01
    %v2381 = vmax.f32 %v2279, %v2373
    %v2382 = vmax.f32 %v2281, %v2374
    %v2383 = vmax.f32 %v2365, %v2375
    %v2384 = vmax.f32 %v2367, %v2376
    %v2385 = vmax.f32 %v2283, %v2377
    %v2386 = vmax.f32 %v2285, %v2378
    %v2387 = vmax.f32 %v2369, %v2379
    %v2388 = vmax.f32 %v2371, %v2380
    %v2389 = vld [vmem:[%s9] sm:$0xf]
    %v2390 = vpack.c.bf16 %v2385, %v2381
    %v2391 = vpack.c.bf16 %v2386, %v2382
    %v2392 = vpack.c.bf16 %v2387, %v2383
    %v2393 = vpack.c.bf16 %v2388, %v2384
    %s2394 = sld [smem:[#allocation2]]
    %v2395 = vstv %s2394
    %v2398 = vunpack.c.l.s4 1966171168
    %v2399 = vunpack.c.0.s8 %v2398
    %v2400 = vlaneseq
    %v2401 = vshrl.u32 %v2400, 7
    %v2402 = vsub.s32 %v2399, %v2401
    %v2403 = vrot.slane %v2389, %v2402
    %v2404 = vcombine.high %v2403, %v2403
    %v2406 = vunpack.c.l.s4 1966171168
    %v2407 = vunpack.c.0.s8 %v2406
    %v2408 = vlaneseq
    %v2409 = vshrl.u32 %v2408, 7
    %v2410 = vsub.s32 %v2407, %v2409
    %v2411 = vrot.slane %v2403, %v2410
    %v2413 = vunpack.c.l.s4 1966171168
    %v2414 = vunpack.c.0.s8 %v2413
    %v2415 = vlaneseq
    %v2416 = vshrl.u32 %v2415, 7
    %v2417 = vsub.s32 %v2414, %v2416
    %v2418 = vrot.slane %v2404, %v2417
    %v2419 = vcombine.high %v2411, %v2411
    %v2420 = vcombine.high %v2418, %v2418
    %2425 = vmatprep.subr.bf16.mxu0 %v2391
    %2426 = vmatpush1.bf16.xpose.msra.mxu0 %v2390
    %2427 = vmatprep.subr.bf16.mxu0 0
    %2428 = vmatpush1.bf16.xpose.msra.mxu0 0
    %2429 = vmatprep.subr.bf16.mxu0 0
    %2430 = vmatpush1.bf16.xpose.msra.mxu0 0
    %2431 = vmatprep.subr.bf16.mxu0 0
    %2432 = vmatpush1.bf16.xpose.msra.mxu0 0
    %2433 = vmatprep.subr.bf16.mxu0 0
    %2434 = vmatpush1.bf16.xpose.msra.mxu0 0
    %2435 = vmatprep.subr.bf16.mxu0 0
    %2436 = vmatpush1.bf16.xpose.msra.mxu0 0
    %2437 = vmatprep.subr.bf16.mxu0 0
    %2438 = vmatpush1.bf16.xpose.msra.mxu0 0
    %2439 = vmatprep.subr.bf16.mxu0 0
    %2440 = vmatpush1.bf16.xpose.msra.mxu0 0
    %2441 = vmatprep.subr.bf16.mxu0 0
    %2442 = vmatpush1.bf16.xpose.msra.mxu0 0
    %2443 = vmatprep.subr.bf16.mxu0 0
    %2444 = vmatpush1.bf16.xpose.msra.mxu0 0
    %2445 = vmatprep.subr.bf16.mxu0 0
    %2446 = vmatpush1.bf16.xpose.msra.mxu0 0
    %2447 = vmatprep.subr.bf16.mxu0 0
    %2448 = vmatpush1.bf16.xpose.msra.mxu0 0
    %2449 = vmatprep.subr.bf16.mxu0 0
    %2450 = vmatpush1.bf16.xpose.msra.mxu0 0
    %2451 = vmatprep.subr.bf16.mxu0 0
    %2452 = vmatpush1.bf16.xpose.msra.mxu0 0
    %2453 = vmatprep.subr.bf16.mxu0 0
    %2454 = vmatpush1.bf16.xpose.msra.mxu0 0
    %2455 = vmatprep.subr.bf16.mxu0 0
    %2456 = vmatpush1.bf16.xpose.msra.mxu0 0
    %2457 = vmatprep.mubr.bf16.mxu0 %v2418
    %2458 = vmatmul.mubr.bf16.gmra.mrb[0].mxu0 %v2411
    %v2459 = vpop.f32.mrb[0].mxu0
    %v2460 = vadd.f32 %v2395, %v2459
    %v2461 = vpop.f32.mrb[0].mxu0
    %v2462 = vpop.f32.mrb[0].mxu0
    %v2463 = vpop.f32.mrb[0].mxu0
    %2464 = vdwg.mxu0
    %2465 = vmatprep.subr.bf16.mxu0 %v2393
    %2466 = vmatpush1.bf16.xpose.msra.mxu0 %v2392
    %2467 = vmatprep.subr.bf16.mxu0 0
    %2468 = vmatpush1.bf16.xpose.msra.mxu0 0
    %2469 = vmatprep.subr.bf16.mxu0 0
    %2470 = vmatpush1.bf16.xpose.msra.mxu0 0
    %2471 = vmatprep.subr.bf16.mxu0 0
    %2472 = vmatpush1.bf16.xpose.msra.mxu0 0
    %2473 = vmatprep.subr.bf16.mxu0 0
    %2474 = vmatpush1.bf16.xpose.msra.mxu0 0
    %2475 = vmatprep.subr.bf16.mxu0 0
    %2476 = vmatpush1.bf16.xpose.msra.mxu0 0
    %2477 = vmatprep.subr.bf16.mxu0 0
    %2478 = vmatpush1.bf16.xpose.msra.mxu0 0
    %2479 = vmatprep.subr.bf16.mxu0 0
    %2480 = vmatpush1.bf16.xpose.msra.mxu0 0
    %2481 = vmatprep.subr.bf16.mxu0 0
    %2482 = vmatpush1.bf16.xpose.msra.mxu0 0
    %2483 = vmatprep.subr.bf16.mxu0 0
    %2484 = vmatpush1.bf16.xpose.msra.mxu0 0
    %2485 = vmatprep.subr.bf16.mxu0 0
    %2486 = vmatpush1.bf16.xpose.msra.mxu0 0
    %2487 = vmatprep.subr.bf16.mxu0 0
    %2488 = vmatpush1.bf16.xpose.msra.mxu0 0
    %2489 = vmatprep.subr.bf16.mxu0 0
    %2490 = vmatpush1.bf16.xpose.msra.mxu0 0
    %2491 = vmatprep.subr.bf16.mxu0 0
    %2492 = vmatpush1.bf16.xpose.msra.mxu0 0
    %2493 = vmatprep.subr.bf16.mxu0 0
    %2494 = vmatpush1.bf16.xpose.msra.mxu0 0
    %2495 = vmatprep.subr.bf16.mxu0 0
    %2496 = vmatpush1.bf16.xpose.msra.mxu0 0
    %2497 = vmatprep.mubr.bf16.mxu0 %v2420
    %2498 = vmatmul.mubr.bf16.gmra.mrb[0].mxu0 %v2419
    %v2499 = vpop.f32.mrb[0].mxu0
    %v2500 = vadd.f32 %v2460, %v2499
    %v2501 = vpop.f32.mrb[0].mxu0
    %v2502 = vpop.f32.mrb[0].mxu0
    %v2503 = vpop.f32.mrb[0].mxu0
    %2504 = vdwg.mxu0
    %v2505 = vxor.u32 %v2500, 2147483648
    %v2506 = vmul.f32 %v2505, 1.442695
    %v2507 = vpow.pop %v2506
    %v2508 = vadd.f32 %v2507, 1.0
    %v2509 = vrcp.pop %v2508
    %v2510 = vmul.f32 1.0, %v2509
    %vm2511 = vcmask 122880
    %2512 = vst.msk [vmem:[#allocation12] sm:$0x1] %vm2511, %v2510
    // Predicated region
    $region66: #{tpu_custom_call.1} parent=1 // pred_check
      _
    $region67: #{tpu_custom_call.1} parent=1 // pred_check_branch
      %2514 = sbr.rel (0) target = $region69
    $region68: #{tpu_custom_call.1} parent=1 // pred_region
      %s2516 = ssub.s32 16, 16
      %2517 = vsyncadd [#allocation5], %s2516
      %s2519 = sshll.u32 [#allocation12], 4
      %s2520 = int_to_ptr.vmem [resolvable:$true] %s2519
      %2522 = dma.vmem_to_hbm [thread:$0]  %s2520, 16, %s11, [#allocation5]
    $region69: #{tpu_custom_call.1} parent=1 // pred_fallthru
      _
    // Predicated region
    $region70: #{tpu_custom_call.1} parent=1 // pred_check
      _
    $region71: #{tpu_custom_call.1} parent=1 // pred_check_branch
      %2524 = sbr.rel (0) target = $region73
    $region72: #{tpu_custom_call.1} parent=1 // pred_region
      %2525 = dma.done [#allocation5], 16
    $region73: #{tpu_custom_call.1} parent=1 // pred_fallthru
      _
    %2526 = vsyncpa [#allocation4], 1
    %2527 = vsyncpa [#allocation7], 1
    %2528 = vsyncpa [#allocation10], 1
    %2529 = vsyncpa [#allocation5], 1

</llo_original>
